<compile_context>
chip_gen: v7x
topology: tpu7x:2x2x1
jax: 0.10.0
libtpu: 0.0.40
codegen_flags: <defaults>
</compile_context>

<pallas_src>
import jax
import jax.numpy as jnp
from jax.experimental import pallas as pl
from jax.experimental.pallas import tpu as pltpu

NEG_SLOPE = 0.01  # nn.LeakyReLU default negative_slope


def _node_update_kernel(node_ref, edge_ref, w1_ref, b1_ref, w2_ref, b2_ref,
                        out_ref):
    # One grid step == TB tasks.
    node = node_ref[...]                       # (TB, N, D)    f32
    edges = edge_ref[...]                      # (TB, 2, N, N) f32
    tb, n, d = node.shape

    # Diag mask via broadcasted_iota (no jnp.eye), then L1 row-normalize:
    # F.normalize(p=1, dim=-1) == x / max(sum|x|, eps), eps=1e-12.
    row = jax.lax.broadcasted_iota(jnp.int32, (n, n), 0)
    col = jax.lax.broadcasted_iota(jnp.int32, (n, n), 1)
    mask = (row != col).astype(node.dtype)     # (N, N)

    e = edges * mask[None, None]               # (TB, 2, N, N)
    denom = jnp.maximum(jnp.sum(jnp.abs(e), axis=-1, keepdims=True), 1e-12)
    e = e * pl.reciprocal(denom, approx=True)  # EUP slot, not a VPU divide

    # Fused aggregation: one batched (TB, 2N, N) @ (TB, N, D) matmul instead
    # of two per task.
    e2 = e.reshape(tb, 2 * n, n)
    aggr = jax.lax.dot_general(
        e2, node,
        dimension_numbers=(((2,), (1,)), ((0,), (0,))),
        preferred_element_type=jnp.float32)    # (TB, 2N, D)

    node_flat = node.reshape(tb * n, d).astype(jnp.bfloat16)
    aggr0 = aggr[:, :n, :].reshape(tb * n, d).astype(jnp.bfloat16)
    aggr1 = aggr[:, n:, :].reshape(tb * n, d).astype(jnp.bfloat16)

    # conv0 (1x1, no bias) with BN0 scale pre-folded into w1; the lane-axis
    # concat is replaced by three partial matmuls against static slices of w1.
    h1 = jnp.dot(node_flat, w1_ref[:d, :], preferred_element_type=jnp.float32)
    h1 = h1 + jnp.dot(aggr0, w1_ref[d:2 * d, :],
                      preferred_element_type=jnp.float32)
    h1 = h1 + jnp.dot(aggr1, w1_ref[2 * d:, :],
                      preferred_element_type=jnp.float32)
    h1 = h1 + b1_ref[...]                      # folded BN0 bias (f32)
    h1 = jnp.maximum(h1, NEG_SLOPE * h1)       # LeakyReLU (single VPU max)

    # conv1 (1x1, no bias) + folded BN1 + LeakyReLU
    h2 = jnp.dot(h1.astype(jnp.bfloat16), w2_ref[...],
                 preferred_element_type=jnp.float32)
    h2 = h2 + b2_ref[...]
    h2 = jnp.maximum(h2, NEG_SLOPE * h2)

    out_ref[...] = h2.reshape(tb, n, -1).astype(out_ref.dtype)


def _choose_task_block(T, N, D, H2, target_rows=256, vmem_budget=8 << 20):
    """Largest divisor of T that (a) stays inside a conservative VMEM budget
    for the double-buffered per-step blocks and (b) stops growing once the
    dense-matmul row count reaches target_rows."""
    def block_bytes(tb):
        node = tb * N * D * 4
        edge = tb * 2 * N * N * 4
        out = tb * N * H2 * 4
        return 2 * (node + edge + out)         # double-buffered in/out blocks

    best = 1
    for tb in range(1, T + 1):
        if T % tb != 0:
            continue
        if block_bytes(tb) > vmem_budget:
            break
        best = tb
        if tb * N >= target_rows:
            break
    return best


def node_update_forward(node_feat, edge_feat, params):
    """node_feat: (T, N, 256) f32, edge_feat: (T, 2, N, N) f32 -> (T, N, 256)."""
    T, N, D = node_feat.shape
    w1, s1, b1, w2, s2, b2 = params
    H1 = w1.shape[1]
    H2 = w2.shape[1]

    # Fold the BN scale into the weights (column scale) at wrapper time and
    # cast the dense weights to bf16 for the MXU; biases stay f32.
    w1f = (w1 * s1).astype(jnp.bfloat16)       # (3D, H1)
    w2f = (w2 * s2).astype(jnp.bfloat16)       # (H1, H2)
    b1f = b1.astype(jnp.float32)               # (1, H1)
    b2f = b2.astype(jnp.float32)               # (1, H2)

    TB = _choose_task_block(T, N, D, H2)

    return pl.pallas_call(
        _node_update_kernel,
        out_shape=jax.ShapeDtypeStruct((T, N, H2), jnp.float32),
        grid_spec=pltpu.PrefetchScalarGridSpec(
            num_scalar_prefetch=0,
            grid=(T // TB,),
            in_specs=[
                pl.BlockSpec((TB, N, D), lambda t: (t, 0, 0)),
                pl.BlockSpec((TB, 2, N, N), lambda t: (t, 0, 0, 0)),
                # constant index maps: weights/biases fetched once, resident
                pl.BlockSpec((3 * D, H1), lambda t: (0, 0)),
                pl.BlockSpec((1, H1), lambda t: (0, 0)),
                pl.BlockSpec((H1, H2), lambda t: (0, 0)),
                pl.BlockSpec((1, H2), lambda t: (0, 0)),
            ],
            out_specs=pl.BlockSpec((TB, N, H2), lambda t: (t, 0, 0)),
        ),
        compiler_params=pltpu.CompilerParams(
            dimension_semantics=("parallel",),
            vmem_limit_bytes=32 * 1024 * 1024),
    )(node_feat, edge_feat, w1f, b1f, w2f, b2f)


def make_params(key):
    """Deterministic synthetic parameters matching the module's __init__ shapes.

    conv0: Conv2d(768 -> 512, k=1, bias=False), BN(512)
    conv1: Conv2d(512 -> 256, k=1, bias=False), BN(256)
    BN is folded (eval mode): scale = gamma/sqrt(var+eps), bias = beta - mean*scale.
    """
    D, H1, H2 = 256, 512, 256
    ks = jax.random.split(key, 10)
    eps = 1e-5

    w1 = jax.random.normal(ks[0], (3 * D, H1), jnp.float32) * 0.02
    g1 = 1.0 + 0.1 * jax.random.normal(ks[1], (1, H1), jnp.float32)
    be1 = 0.1 * jax.random.normal(ks[2], (1, H1), jnp.float32)
    mu1 = 0.1 * jax.random.normal(ks[3], (1, H1), jnp.float32)
    var1 = jnp.abs(jax.random.normal(ks[4], (1, H1), jnp.float32)) + 0.5
    s1 = g1 / jnp.sqrt(var1 + eps)
    b1 = be1 - mu1 * s1

    w2 = jax.random.normal(ks[5], (H1, H2), jnp.float32) * 0.02
    g2 = 1.0 + 0.1 * jax.random.normal(ks[6], (1, H2), jnp.float32)
    be2 = 0.1 * jax.random.normal(ks[7], (1, H2), jnp.float32)
    mu2 = 0.1 * jax.random.normal(ks[8], (1, H2), jnp.float32)
    var2 = jnp.abs(jax.random.normal(ks[9], (1, H2), jnp.float32)) + 0.5
    s2 = g2 / jnp.sqrt(var2 + eps)
    b2 = be2 - mu2 * s2

    return (w1, s1, b1, w2, s2, b2)


def reference_forward(node_feat, edge_feat, params):
    """Pure-JAX f32 reference mirroring the PyTorch forward (eval-mode BN).
    Dropout2d is a no-op here (dropout=0.0 default / eval mode)."""
    w1, s1, b1, w2, s2, b2 = params
    T, N, D = node_feat.shape
    mask = 1.0 - jnp.eye(N, dtype=node_feat.dtype)           # (N, N)
    ef = edge_feat * mask[None, None]                         # (T, 2, N, N)
    ef = ef / jnp.maximum(jnp.sum(jnp.abs(ef), -1, keepdims=True), 1e-12)
    aggr0 = jnp.einsum('tij,tjd->tid', ef[:, 0], node_feat)
    aggr1 = jnp.einsum('tij,tjd->tid', ef[:, 1], node_feat)
    feat = jnp.concatenate([node_feat, aggr0, aggr1], -1)     # (T, N, 3D)
    h1 = feat @ w1
    h1 = h1 * s1 + b1
    h1 = jnp.where(h1 >= 0, h1, NEG_SLOPE * h1)
    h2 = h1 @ w2
    h2 = h2 * s2 + b2
    h2 = jnp.where(h2 >= 0, h2, NEG_SLOPE * h2)
    return h2


if __name__ == "__main__":
    key = jax.random.PRNGKey(0)
    k_node, k_edge, k_param = jax.random.split(key, 3)

    T, N, D = 2, 8, 256  # in_features is hard-coded to 256 in the module
    node_feat = jax.random.normal(k_node, (T, N, D), jnp.float32)
    edge_feat = jax.nn.softmax(
        jax.random.normal(k_edge, (T, 2, N, N), jnp.float32), axis=-1)

    params = make_params(k_param)

    out = node_update_forward(node_feat, edge_feat, params)
    out = jax.block_until_ready(out)

    ref = reference_forward(node_feat, edge_feat, params)
    assert out.shape == (T, N, 256)
    # Tolerance relaxed vs. the f32 reference because the dense matmuls run
    # in native bf16 on the MXU (f32 accumulation) and the L1 normalization
    # uses the approximate EUP reciprocal.
    assert jnp.allclose(out, ref, atol=5e-2, rtol=5e-2), "mismatch vs reference"

    print("KERNEL_OK")
</pallas_src>

<mosaic_0001>
module attributes {stable_mosaic.version = 11 : i64} {
  func.func @_node_update_kernel(%arg0: i32, %arg1: memref<2x8x256xf32, #tpu.memory_space<vmem>>, %arg2: memref<2x2x8x8xf32, #tpu.memory_space<vmem>>, %arg3: memref<768x512xbf16, #tpu.memory_space<vmem>>, %arg4: memref<1x512xf32, #tpu.memory_space<vmem>>, %arg5: memref<512x256xbf16, #tpu.memory_space<vmem>>, %arg6: memref<1x256xf32, #tpu.memory_space<vmem>>, %arg7: memref<2x8x256xf32, #tpu.memory_space<vmem>>) attributes {dimension_semantics = [#tpu.dimension_semantics<parallel>], iteration_bounds = array<i64: 1>, scalar_prefetch = 0 : i64, scratch_operands = 0 : i64, tpu.core_type = #tpu.core_type<tc>, window_params = [{transform_indices = @transform_0, window_bounds = array<i64: 2, 8, 256>}, {transform_indices = @transform_1, window_bounds = array<i64: 2, 2, 8, 8>}, {pipeline_mode = #tpu.pipeline_mode<synchronous>, transform_indices = @transform_2, window_bounds = array<i64: 768, 512>}, {pipeline_mode = #tpu.pipeline_mode<synchronous>, transform_indices = @transform_3, window_bounds = array<i64: 1, 512>}, {pipeline_mode = #tpu.pipeline_mode<synchronous>, transform_indices = @transform_4, window_bounds = array<i64: 512, 256>}, {pipeline_mode = #tpu.pipeline_mode<synchronous>, transform_indices = @transform_5, window_bounds = array<i64: 1, 256>}, {transform_indices = @transform_6, window_bounds = array<i64: 2, 8, 256>}]} {
    %c0 = arith.constant 0 : index
    %c0_0 = arith.constant 0 : index
    %c0_1 = arith.constant 0 : index
    %0 = vector.load %arg1[%c0, %c0_0, %c0_1] : memref<2x8x256xf32, #tpu.memory_space<vmem>>, vector<2x8x256xf32>
    %c0_2 = arith.constant 0 : index
    %c0_3 = arith.constant 0 : index
    %c0_4 = arith.constant 0 : index
    %c0_5 = arith.constant 0 : index
    %1 = vector.load %arg2[%c0_2, %c0_3, %c0_4, %c0_5] : memref<2x2x8x8xf32, #tpu.memory_space<vmem>>, vector<2x2x8x8xf32>
    %2 = tpu.iota {dimensions = array<i32: 0>} : vector<8x8xi32>
    %3 = tpu.iota {dimensions = array<i32: 1>} : vector<8x8xi32>
    %4 = arith.cmpi ne, %2, %3 : vector<8x8xi32>
    %5 = arith.extui %4 : vector<8x8xi1> to vector<8x8xi32>
    %6 = arith.sitofp %5 : vector<8x8xi32> to vector<8x8xf32>
    %7 = vector.shape_cast %6 : vector<8x8xf32> to vector<1x1x8x8xf32>
    %8 = vector.broadcast %7 : vector<1x1x8x8xf32> to vector<2x2x8x8xf32>
    %9 = arith.mulf %1, %8 : vector<2x2x8x8xf32>
    %10 = math.absf %9 : vector<2x2x8x8xf32>
    %cst = arith.constant dense<0.000000e+00> : vector<2x2x8xf32>
    %11 = vector.multi_reduction <add>, %10, %cst [3] : vector<2x2x8x8xf32> to vector<2x2x8xf32>
    %12 = vector.shape_cast %11 : vector<2x2x8xf32> to vector<2x2x8x1xf32>
    %cst_6 = arith.constant 9.99999996E-13 : f32
    %13 = vector.broadcast %cst_6 : f32 to vector<2x2x8x1xf32>
    %14 = arith.maximumf %12, %13 : vector<2x2x8x1xf32>
    %15 = tpu.reciprocal %14 {approx = true} : vector<2x2x8x1xf32> -> vector<2x2x8x1xf32>
    %16 = vector.broadcast %15 : vector<2x2x8x1xf32> to vector<2x2x8x8xf32>
    %17 = arith.mulf %9, %16 : vector<2x2x8x8xf32>
    %18 = vector.shape_cast %17 : vector<2x2x8x8xf32> to vector<2x16x8xf32>
    %cst_7 = arith.constant dense<0.000000e+00> : vector<2x16x256xf32>
    %19 = tpu.matmul %18, %0, %cst_7 {dimension_numbers = #tpu.dot_dimension_numbers<[2], [1], [1], [2], [0, 0, 0, 1, 1, 2], [0], [0]>} : vector<2x16x8xf32>, vector<2x8x256xf32>, vector<2x16x256xf32> -> vector<2x16x256xf32>
    %20 = vector.shape_cast %0 : vector<2x8x256xf32> to vector<16x256xf32>
    %21 = arith.truncf %20 : vector<16x256xf32> to vector<16x256xbf16>
    %22 = vector.extract_strided_slice %19 {offsets = [0, 0, 0], sizes = [2, 8, 256], strides = [1, 1, 1]} : vector<2x16x256xf32> to vector<2x8x256xf32>
    %23 = vector.shape_cast %22 : vector<2x8x256xf32> to vector<16x256xf32>
    %24 = arith.truncf %23 : vector<16x256xf32> to vector<16x256xbf16>
    %25 = vector.extract_strided_slice %19 {offsets = [0, 8, 0], sizes = [2, 8, 256], strides = [1, 1, 1]} : vector<2x16x256xf32> to vector<2x8x256xf32>
    %26 = vector.shape_cast %25 : vector<2x8x256xf32> to vector<16x256xf32>
    %27 = arith.truncf %26 : vector<16x256xf32> to vector<16x256xbf16>
    %c0_8 = arith.constant 0 : index
    %c0_9 = arith.constant 0 : index
    %28 = vector.load %arg3[%c0_8, %c0_9] : memref<768x512xbf16, #tpu.memory_space<vmem>>, vector<256x512xbf16>
    %cst_10 = arith.constant dense<0.000000e+00> : vector<16x512xf32>
    %29 = tpu.matmul %21, %28, %cst_10 {dimension_numbers = #tpu.dot_dimension_numbers<[1], [0], [0], [1], [0, 0, 1, 1], [], []>} : vector<16x256xbf16>, vector<256x512xbf16>, vector<16x512xf32> -> vector<16x512xf32>
    %c256 = arith.constant 256 : index
    %c0_11 = arith.constant 0 : index
    %30 = vector.load %arg3[%c256, %c0_11] : memref<768x512xbf16, #tpu.memory_space<vmem>>, vector<256x512xbf16>
    %cst_12 = arith.constant dense<0.000000e+00> : vector<16x512xf32>
    %31 = tpu.matmul %24, %30, %cst_12 {dimension_numbers = #tpu.dot_dimension_numbers<[1], [0], [0], [1], [0, 0, 1, 1], [], []>} : vector<16x256xbf16>, vector<256x512xbf16>, vector<16x512xf32> -> vector<16x512xf32>
    %32 = arith.addf %29, %31 : vector<16x512xf32>
    %c512 = arith.constant 512 : index
    %c0_13 = arith.constant 0 : index
    %33 = vector.load %arg3[%c512, %c0_13] : memref<768x512xbf16, #tpu.memory_space<vmem>>, vector<256x512xbf16>
    %cst_14 = arith.constant dense<0.000000e+00> : vector<16x512xf32>
    %34 = tpu.matmul %27, %33, %cst_14 {dimension_numbers = #tpu.dot_dimension_numbers<[1], [0], [0], [1], [0, 0, 1, 1], [], []>} : vector<16x256xbf16>, vector<256x512xbf16>, vector<16x512xf32> -> vector<16x512xf32>
    %35 = arith.addf %32, %34 : vector<16x512xf32>
    %c0_15 = arith.constant 0 : index
    %c0_16 = arith.constant 0 : index
    %36 = vector.load %arg4[%c0_15, %c0_16] : memref<1x512xf32, #tpu.memory_space<vmem>>, vector<1x512xf32>
    %37 = vector.broadcast %36 : vector<1x512xf32> to vector<16x512xf32>
    %38 = arith.addf %35, %37 : vector<16x512xf32>
    %cst_17 = arith.constant 0.00999999977 : f32
    %39 = vector.broadcast %cst_17 : f32 to vector<16x512xf32>
    %40 = arith.mulf %39, %38 : vector<16x512xf32>
    %41 = arith.maximumf %38, %40 : vector<16x512xf32>
    %42 = arith.truncf %41 : vector<16x512xf32> to vector<16x512xbf16>
    %c0_18 = arith.constant 0 : index
    %c0_19 = arith.constant 0 : index
    %43 = vector.load %arg5[%c0_18, %c0_19] : memref<512x256xbf16, #tpu.memory_space<vmem>>, vector<512x256xbf16>
    %cst_20 = arith.constant dense<0.000000e+00> : vector<16x256xf32>
    %44 = tpu.matmul %42, %43, %cst_20 {dimension_numbers = #tpu.dot_dimension_numbers<[1], [0], [0], [1], [0, 0, 1, 1], [], []>} : vector<16x512xbf16>, vector<512x256xbf16>, vector<16x256xf32> -> vector<16x256xf32>
    %c0_21 = arith.constant 0 : index
    %c0_22 = arith.constant 0 : index
    %45 = vector.load %arg6[%c0_21, %c0_22] : memref<1x256xf32, #tpu.memory_space<vmem>>, vector<1x256xf32>
    %46 = vector.broadcast %45 : vector<1x256xf32> to vector<16x256xf32>
    %47 = arith.addf %44, %46 : vector<16x256xf32>
    %cst_23 = arith.constant 0.00999999977 : f32
    %48 = vector.broadcast %cst_23 : f32 to vector<16x256xf32>
    %49 = arith.mulf %48, %47 : vector<16x256xf32>
    %50 = arith.maximumf %47, %49 : vector<16x256xf32>
    %51 = vector.shape_cast %50 : vector<16x256xf32> to vector<2x8x256xf32>
    %c0_24 = arith.constant 0 : index
    %c0_25 = arith.constant 0 : index
    %c0_26 = arith.constant 0 : index
    %52 = vector.load %arg7[%c0_24, %c0_25, %c0_26] : memref<2x8x256xf32, #tpu.memory_space<vmem>>, vector<2x8x256xf32>
    tpu.vector_store %arg7[%c0_24, %c0_25, %c0_26], %51 {strides = array<i32>} : memref<2x8x256xf32, #tpu.memory_space<vmem>>, vector<2x8x256xf32>,
    return
  }
  func.func @transform_0(%arg0: i32) -> (i32, i32, i32) {
    %c0_i32 = arith.constant 0 : i32
    %c0_i32_0 = arith.constant 0 : i32
    %c0_i32_1 = arith.constant 0 : i32
    return %arg0, %c0_i32, %c0_i32_0 : i32, i32, i32
  }
  func.func @transform_1(%arg0: i32) -> (i32, i32, i32, i32) {
    %c0_i32 = arith.constant 0 : i32
    %c0_i32_0 = arith.constant 0 : i32
    %c0_i32_1 = arith.constant 0 : i32
    %c0_i32_2 = arith.constant 0 : i32
    return %arg0, %c0_i32, %c0_i32_0, %c0_i32_1 : i32, i32, i32, i32
  }
  func.func @transform_2(%arg0: i32) -> (i32, i32) {
    %c0_i32 = arith.constant 0 : i32
    %c0_i32_0 = arith.constant 0 : i32
    %c0_i32_1 = arith.constant 0 : i32
    return %c0_i32, %c0_i32_0 : i32, i32
  }
  func.func @transform_3(%arg0: i32) -> (i32, i32) {
    %c0_i32 = arith.constant 0 : i32
    %c0_i32_0 = arith.constant 0 : i32
    %c0_i32_1 = arith.constant 0 : i32
    return %c0_i32, %c0_i32_0 : i32, i32
  }
  func.func @transform_4(%arg0: i32) -> (i32, i32) {
    %c0_i32 = arith.constant 0 : i32
    %c0_i32_0 = arith.constant 0 : i32
    %c0_i32_1 = arith.constant 0 : i32
    return %c0_i32, %c0_i32_0 : i32, i32
  }
  func.func @transform_5(%arg0: i32) -> (i32, i32) {
    %c0_i32 = arith.constant 0 : i32
    %c0_i32_0 = arith.constant 0 : i32
    %c0_i32_1 = arith.constant 0 : i32
    return %c0_i32, %c0_i32_0 : i32, i32
  }
  func.func @transform_6(%arg0: i32) -> (i32, i32, i32) {
    %c0_i32 = arith.constant 0 : i32
    %c0_i32_0 = arith.constant 0 : i32
    %c0_i32_1 = arith.constant 0 : i32
    return %arg0, %c0_i32, %c0_i32_0 : i32, i32, i32
  }
}

</mosaic_0001>

<llo_original>
// kernel: tpu_custom_call.1
$region0: #{tpu_custom_call.1}
  #allocation0 [shape = 'u32[]', space=smem, size = 0x4, offset = 0x4, fixed_abs, tag = 'smem constant byte address 0x4 - core index']
  #allocation1 [shape = 'u32[144,128]{1,0:T(1,128)}', space=vmem, size = 0x12000, scoped, tag = 'internal scratch']
  %s0 = inlined_call_operand.hbm [shape: f32[2,8,256], index: 0, kind: input, shape index: {}]
  %s1 = inlined_call_operand.hbm [shape: f32[2,2,8,8], index: 1, kind: input, shape index: {}]
  %s2 = inlined_call_operand.hbm [shape: bf16[768,512], index: 2, kind: input, shape index: {}]
  %s3 = inlined_call_operand.vmem [shape: f32[1,512], index: 3, kind: input, shape index: {}]
  %s4 = inlined_call_operand.hbm [shape: bf16[512,256], index: 4, kind: input, shape index: {}]
  %s5 = inlined_call_operand.vmem [shape: f32[1,256], index: 5, kind: input, shape index: {}]
  %s6 = inlined_call_operand.hbm [shape: f32[2,8,256], index: 6, kind: output, shape index: {}]
  %s7 = sld [smem:[#allocation0]]
  $region50: #{tpu_custom_call.1} parent=0
    _
  %s9 = ssub.s32 1, %s7
  %s10 = scalar_select 0, %s9, %s7
  $region1: #{tpu_custom_call.1} parent=0
    #allocation2 [shape = 'u8[16384]{0}', space=vmem, size = 0x4000, scoped, tag = 'input window, operand 0, single buffered']
    #allocation3 [shape = 's32[1]{0}', space=sflag, size = 0x4, scoped, tag = 'scoped memory for tpu_custom_call.1']
    #allocation4 [shape = 's32[1]{0}', space=sflag, size = 0x4, scoped, tag = 'scoped memory for tpu_custom_call.1']
    #allocation5 [shape = 'u8[16384]{0}', space=vmem, size = 0x4000, scoped, tag = 'input window, operand 1, single buffered']
    #allocation6 [shape = 's32[1]{0}', space=sflag, size = 0x4, scoped, tag = 'scoped memory for tpu_custom_call.1']
    #allocation7 [shape = 'u8[786432]{0}', space=vmem, size = 0xc0000, scoped, tag = 'input window, operand 2, single buffered']
    #allocation8 [shape = 'u8[262144]{0}', space=vmem, size = 0x40000, scoped, tag = 'input window, operand 4, single buffered']
    #allocation9 [shape = 's32[1]{0}', space=sflag, size = 0x4, scoped, tag = 'scoped memory for tpu_custom_call.1']
    #allocation10 [shape = 'u8[16384]{0}', space=vmem, size = 0x4000, scoped, tag = 'output window, operand 0, single buffered']
    %11 = vsyncpa [#allocation3], 0
    %12 = vsyncpa [#allocation6], 0
    %13 = vsyncpa [#allocation9], 0
    %14 = vsyncpa [#allocation4], 0
    // Predicated region
    $region2: #{tpu_custom_call.1} parent=1 // pred_check
      _
    $region3: #{tpu_custom_call.1} parent=1 // pred_check_branch
      %16 = sbr.rel (0) target = $region5
    $region4: #{tpu_custom_call.1} parent=1 // pred_region
      %s18 = ssub.s32 512, 512
      %19 = vsyncadd [#allocation3], %s18
      %s20 = sshll.u32 [#allocation2], 4
      %s21 = int_to_ptr.vmem [resolvable:$true] %s20
      %26 = dma.hbm_to_vmem [thread:$0]  %s0, 512, %s21, [#allocation3], 256, 256, 16
    $region5: #{tpu_custom_call.1} parent=1 // pred_fallthru
      _
    // Predicated region
    $region6: #{tpu_custom_call.1} parent=1 // pred_check
      _
    $region7: #{tpu_custom_call.1} parent=1 // pred_check_branch
      %28 = sbr.rel (0) target = $region9
    $region8: #{tpu_custom_call.1} parent=1 // pred_region
      %s30 = ssub.s32 512, 512
      %31 = vsyncadd [#allocation6], %s30
      %s32 = sshll.u32 [#allocation5], 4
      %s33 = int_to_ptr.vmem [resolvable:$true] %s32
      %38 = dma.hbm_to_vmem [thread:$0]  %s1, 512, %s33, [#allocation6], 128, 128, 8
    $region9: #{tpu_custom_call.1} parent=1 // pred_fallthru
      _
    // Predicated region
    $region10: #{tpu_custom_call.1} parent=1 // pred_check
      _
    $region11: #{tpu_custom_call.1} parent=1 // pred_check_branch
      %40 = sbr.rel (0) target = $region13
    $region12: #{tpu_custom_call.1} parent=1 // pred_region
      %s42 = ssub.s32 24576, 24576
      %43 = vsyncadd [#allocation6], %s42
      %s44 = sshll.u32 [#allocation7], 4
      %s45 = int_to_ptr.vmem [resolvable:$true] %s44
      %50 = dma.hbm_to_vmem [thread:$0]  %s2, 24576, %s45, [#allocation6], 256, 256, 16
    $region13: #{tpu_custom_call.1} parent=1 // pred_fallthru
      _
    // Predicated region
    $region14: #{tpu_custom_call.1} parent=1 // pred_check
      _
    $region15: #{tpu_custom_call.1} parent=1 // pred_check_branch
      %52 = sbr.rel (0) target = $region17
    $region16: #{tpu_custom_call.1} parent=1 // pred_region
      _
    $region17: #{tpu_custom_call.1} parent=1 // pred_fallthru
      _
    // Predicated region
    $region18: #{tpu_custom_call.1} parent=1 // pred_check
      _
    $region19: #{tpu_custom_call.1} parent=1 // pred_check_branch
      %54 = sbr.rel (0) target = $region21
    $region20: #{tpu_custom_call.1} parent=1 // pred_region
      %s56 = ssub.s32 8192, 8192
      %57 = vsyncadd [#allocation9], %s56
      %s58 = sshll.u32 [#allocation8], 4
      %s59 = int_to_ptr.vmem [resolvable:$true] %s58
      %64 = dma.hbm_to_vmem [thread:$0]  %s4, 8192, %s59, [#allocation9], 128, 128, 8
    $region21: #{tpu_custom_call.1} parent=1 // pred_fallthru
      _
    // Predicated region
    $region22: #{tpu_custom_call.1} parent=1 // pred_check
      _
    $region23: #{tpu_custom_call.1} parent=1 // pred_check_branch
      %66 = sbr.rel (0) target = $region25
    $region24: #{tpu_custom_call.1} parent=1 // pred_region
      _
    $region25: #{tpu_custom_call.1} parent=1 // pred_fallthru
      _
    // Predicated region
    $region26: #{tpu_custom_call.1} parent=1 // pred_check
      _
    $region27: #{tpu_custom_call.1} parent=1 // pred_check_branch
      %68 = sbr.rel (0) target = $region29
    $region28: #{tpu_custom_call.1} parent=1 // pred_region
      %69 = dma.done [#allocation3], 512
    $region29: #{tpu_custom_call.1} parent=1 // pred_fallthru
      _
    // Predicated region
    $region30: #{tpu_custom_call.1} parent=1 // pred_check
      _
    $region31: #{tpu_custom_call.1} parent=1 // pred_check_branch
      %71 = sbr.rel (0) target = $region33
    $region32: #{tpu_custom_call.1} parent=1 // pred_region
      %72 = dma.done [#allocation6], 512
    $region33: #{tpu_custom_call.1} parent=1 // pred_fallthru
      _
    // Predicated region
    $region34: #{tpu_custom_call.1} parent=1 // pred_check
      _
    $region35: #{tpu_custom_call.1} parent=1 // pred_check_branch
      %74 = sbr.rel (0) target = $region37
    $region36: #{tpu_custom_call.1} parent=1 // pred_region
      %75 = dma.done [#allocation6], 24576
    $region37: #{tpu_custom_call.1} parent=1 // pred_fallthru
      _
    // Predicated region
    $region38: #{tpu_custom_call.1} parent=1 // pred_check
      _
    $region39: #{tpu_custom_call.1} parent=1 // pred_check_branch
      %77 = sbr.rel (0) target = $region41
    $region40: #{tpu_custom_call.1} parent=1 // pred_region
      %78 = dma.done [#allocation9], 8192
    $region41: #{tpu_custom_call.1} parent=1 // pred_fallthru
      _
    %v79 = vld [vmem:[#allocation2] sm:$0xff]
    %v80 = vld [vmem:[#allocation2 + $0x8] sm:$0xff]
    %v81 = vld [vmem:[#allocation2 + $0x10] sm:$0xff]
    %v82 = vld [vmem:[#allocation2 + $0x18] sm:$0xff]
    %v83 = vld [vmem:[#allocation5] sm:$0xff]
    %v84 = vld [vmem:[#allocation5 + $0x8] sm:$0xff]
    %v85 = vld [vmem:[#allocation5 + $0x10] sm:$0xff]
    %v86 = vld [vmem:[#allocation5 + $0x18] sm:$0xff]
    %v87 = vlaneseq
    %v88 = vshrl.u32 %v87, 7
    %v89 = vlaneseq
    %v90 = vand.u32 %v89, 127
    %vm91 = vcmp.ne.s32.totalorder %v88, %v90
    %v92 = vsel %vm91, 1, 0
    %v93 = vcvt.s32.f32 %v92
    %v94 = vmul.f32 %v83, %v93
    %v95 = vmul.f32 %v84, %v93
    %v96 = vmul.f32 %v85, %v93
    %v97 = vmul.f32 %v86, %v93
    %v98 = vand.u32 2147483647, %v94
    %v99 = vand.u32 2147483647, %v95
    %v100 = vand.u32 2147483647, %v96
    %v101 = vand.u32 2147483647, %v97
    %vm102 = vcmask 64512
    %v103 = vsel %vm102, %v98, 0.0
    %104 = vadd.xlane.f32.xlu0 %v103
    %v105 = vpop.xlane.xlu0 %104
    %v106 = vsel %vm102, %v99, 0.0
    %107 = vadd.xlane.f32.xlu0 %v106
    %v108 = vpop.xlane.xlu0 %107
    %v109 = vsel %vm102, %v100, 0.0
    %110 = vadd.xlane.f32.xlu0 %v109
    %v111 = vpop.xlane.xlu0 %110
    %v112 = vsel %vm102, %v101, 0.0
    %113 = vadd.xlane.f32.xlu0 %v112
    %v114 = vpop.xlane.xlu0 %113
    %v115 = vmax.f32 %v105, 1e-12
    %v116 = vmax.f32 %v108, 1e-12
    %v117 = vmax.f32 %v111, 1e-12
    %v118 = vmax.f32 %v114, 1e-12
    %v119 = vrcp.pop %v115
    %v120 = vrcp.pop %v116
    %v121 = vrcp.pop %v117
    %v122 = vrcp.pop %v118
    %v123 = vmul.f32 %v94, %v119
    %v124 = vmul.f32 %v95, %v120
    %v125 = vmul.f32 %v96, %v121
    %v126 = vmul.f32 %v97, %v122
    %v128 = vsel %vm102, %v123, 0
    %v131 = vsel %vm102, %v124, 0
    %133 = vmatprep.subr.mxu0 %v80
    %134 = vmatpush1.msra.mxu0 %v79
    %135 = vmatprep.subr.mxu0 0.0
    %136 = vmatpush1.msra.mxu0 0.0
    %137 = vmatprep.subr.mxu0 0.0
    %138 = vmatpush1.msra.mxu0 0.0
    %139 = vmatprep.subr.mxu0 0.0
    %140 = vmatpush1.msra.mxu0 0.0
    %141 = vmatprep.subr.mxu0 0.0
    %142 = vmatpush1.msra.mxu0 0.0
    %143 = vmatprep.subr.mxu0 0.0
    %144 = vmatpush1.msra.mxu0 0.0
    %145 = vmatprep.subr.mxu0 0.0
    %146 = vmatpush1.msra.mxu0 0.0
    %147 = vmatprep.subr.mxu0 0.0
    %148 = vmatpush1.msra.mxu0 0.0
    %149 = vmatprep.subr.mxu0 0.0
    %150 = vmatpush1.msra.mxu0 0.0
    %151 = vmatprep.subr.mxu0 0.0
    %152 = vmatpush1.msra.mxu0 0.0
    %153 = vmatprep.subr.mxu0 0.0
    %154 = vmatpush1.msra.mxu0 0.0
    %155 = vmatprep.subr.mxu0 0.0
    %156 = vmatpush1.msra.mxu0 0.0
    %157 = vmatprep.subr.mxu0 0.0
    %158 = vmatpush1.msra.mxu0 0.0
    %159 = vmatprep.subr.mxu0 0.0
    %160 = vmatpush1.msra.mxu0 0.0
    %161 = vmatprep.subr.mxu0 0.0
    %162 = vmatpush1.msra.mxu0 0.0
    %163 = vmatprep.subr.mxu0 0.0
    %164 = vmatpush1.msra.mxu0 0.0
    %165 = vmatprep.subr.mxu0 0.0
    %166 = vmatpush1.msra.mxu0 0.0
    %167 = vmatprep.subr.mxu0 0.0
    %168 = vmatpush1.msra.mxu0 0.0
    %169 = vmatprep.subr.mxu0 0.0
    %170 = vmatpush1.msra.mxu0 0.0
    %171 = vmatprep.subr.mxu0 0.0
    %172 = vmatpush1.msra.mxu0 0.0
    %173 = vmatprep.subr.mxu0 0.0
    %174 = vmatpush1.msra.mxu0 0.0
    %175 = vmatprep.subr.mxu0 0.0
    %176 = vmatpush1.msra.mxu0 0.0
    %177 = vmatprep.subr.mxu0 0.0
    %178 = vmatpush1.msra.mxu0 0.0
    %179 = vmatprep.subr.mxu0 0.0
    %180 = vmatpush1.msra.mxu0 0.0
    %181 = vmatprep.subr.mxu0 0.0
    %182 = vmatpush1.msra.mxu0 0.0
    %183 = vmatprep.subr.mxu0 0.0
    %184 = vmatpush1.msra.mxu0 0.0
    %185 = vmatprep.subr.mxu0 0.0
    %186 = vmatpush1.msra.mxu0 0.0
    %187 = vmatprep.subr.mxu0 0.0
    %188 = vmatpush1.msra.mxu0 0.0
    %189 = vmatprep.subr.mxu0 0.0
    %190 = vmatpush1.msra.mxu0 0.0
    %191 = vmatprep.subr.mxu0 0.0
    %192 = vmatpush1.msra.mxu0 0.0
    %193 = vmatprep.subr.mxu0 0.0
    %194 = vmatpush1.msra.mxu0 0.0
    %195 = vmatprep.subr.mxu0 0.0
    %196 = vmatpush1.msra.mxu0 0.0
    %197 = vmatprep.mubr.f32.mxu0 0.0
    %198 = vmatmul.mubr.f32.gmra.mrb[0].mxu0 %v128
    %v199 = vpop.f32.mrb[0].mxu0
    %v200 = vadd.f32 0.0, %v199
    %v201 = vpop.f32.mrb[0].mxu0
    %v202 = vadd.f32 0.0, %v201
    %203 = vmatprep.mubr.f32.mxu0 0.0
    %204 = vmatmul.mubr.f32.gmra.mrb[0].mxu0 %v131
    %v205 = vpop.f32.mrb[0].mxu0
    %v206 = vadd.f32 0.0, %v205
    %v207 = vpop.f32.mrb[0].mxu0
    %v208 = vadd.f32 0.0, %v207
    %209 = vdwg.mxu0
    %v211 = vsel %vm102, %v125, 0
    %v214 = vsel %vm102, %v126, 0
    %216 = vmatprep.subr.mxu0 %v82
    %217 = vmatpush1.msra.mxu0 %v81
    %218 = vmatprep.subr.mxu0 0.0
    %219 = vmatpush1.msra.mxu0 0.0
    %220 = vmatprep.subr.mxu0 0.0
    %221 = vmatpush1.msra.mxu0 0.0
    %222 = vmatprep.subr.mxu0 0.0
    %223 = vmatpush1.msra.mxu0 0.0
    %224 = vmatprep.subr.mxu0 0.0
    %225 = vmatpush1.msra.mxu0 0.0
    %226 = vmatprep.subr.mxu0 0.0
    %227 = vmatpush1.msra.mxu0 0.0
    %228 = vmatprep.subr.mxu0 0.0
    %229 = vmatpush1.msra.mxu0 0.0
    %230 = vmatprep.subr.mxu0 0.0
    %231 = vmatpush1.msra.mxu0 0.0
    %232 = vmatprep.subr.mxu0 0.0
    %233 = vmatpush1.msra.mxu0 0.0
    %234 = vmatprep.subr.mxu0 0.0
    %235 = vmatpush1.msra.mxu0 0.0
    %236 = vmatprep.subr.mxu0 0.0
    %237 = vmatpush1.msra.mxu0 0.0
    %238 = vmatprep.subr.mxu0 0.0
    %239 = vmatpush1.msra.mxu0 0.0
    %240 = vmatprep.subr.mxu0 0.0
    %241 = vmatpush1.msra.mxu0 0.0
    %242 = vmatprep.subr.mxu0 0.0
    %243 = vmatpush1.msra.mxu0 0.0
    %244 = vmatprep.subr.mxu0 0.0
    %245 = vmatpush1.msra.mxu0 0.0
    %246 = vmatprep.subr.mxu0 0.0
    %247 = vmatpush1.msra.mxu0 0.0
    %248 = vmatprep.subr.mxu0 0.0
    %249 = vmatpush1.msra.mxu0 0.0
    %250 = vmatprep.subr.mxu0 0.0
    %251 = vmatpush1.msra.mxu0 0.0
    %252 = vmatprep.subr.mxu0 0.0
    %253 = vmatpush1.msra.mxu0 0.0
    %254 = vmatprep.subr.mxu0 0.0
    %255 = vmatpush1.msra.mxu0 0.0
    %256 = vmatprep.subr.mxu0 0.0
    %257 = vmatpush1.msra.mxu0 0.0
    %258 = vmatprep.subr.mxu0 0.0
    %259 = vmatpush1.msra.mxu0 0.0
    %260 = vmatprep.subr.mxu0 0.0
    %261 = vmatpush1.msra.mxu0 0.0
    %262 = vmatprep.subr.mxu0 0.0
    %263 = vmatpush1.msra.mxu0 0.0
    %264 = vmatprep.subr.mxu0 0.0
    %265 = vmatpush1.msra.mxu0 0.0
    %266 = vmatprep.subr.mxu0 0.0
    %267 = vmatpush1.msra.mxu0 0.0
    %268 = vmatprep.subr.mxu0 0.0
    %269 = vmatpush1.msra.mxu0 0.0
    %270 = vmatprep.subr.mxu0 0.0
    %271 = vmatpush1.msra.mxu0 0.0
    %272 = vmatprep.subr.mxu0 0.0
    %273 = vmatpush1.msra.mxu0 0.0
    %274 = vmatprep.subr.mxu0 0.0
    %275 = vmatpush1.msra.mxu0 0.0
    %276 = vmatprep.subr.mxu0 0.0
    %277 = vmatpush1.msra.mxu0 0.0
    %278 = vmatprep.subr.mxu0 0.0
    %279 = vmatpush1.msra.mxu0 0.0
    %280 = vmatprep.mubr.f32.mxu0 0.0
    %281 = vmatmul.mubr.f32.gmra.mrb[0].mxu0 %v211
    %v282 = vpop.f32.mrb[0].mxu0
    %v283 = vadd.f32 0.0, %v282
    %v284 = vpop.f32.mrb[0].mxu0
    %v285 = vadd.f32 0.0, %v284
    %286 = vmatprep.mubr.f32.mxu0 0.0
    %287 = vmatmul.mubr.f32.gmra.mrb[0].mxu0 %v214
    %v288 = vpop.f32.mrb[0].mxu0
    %v289 = vadd.f32 0.0, %v288
    %v290 = vpop.f32.mrb[0].mxu0
    %v291 = vadd.f32 0.0, %v290
    %292 = vdwg.mxu0
    %v293 = vpack.c.bf16 %v81, %v79
    %v294 = vpack.c.bf16 %v82, %v80
    %v295 = vpack.c.bf16 %v283, %v200
    %v296 = vpack.c.bf16 %v285, %v202
    %v297 = vpack.c.bf16 %v289, %v206
    %v298 = vpack.c.bf16 %v291, %v208
    %v299 = vld [vmem:[#allocation7] sm:$0xff]
    %v300 = vld [vmem:[#allocation7 + $0x8] sm:$0xff]
    %v301 = vld [vmem:[#allocation7 + $0x10] sm:$0xff]
    %v302 = vld [vmem:[#allocation7 + $0x18] sm:$0xff]
    %v303 = vld [vmem:[#allocation7 + $0x20] sm:$0xff]
    %v304 = vld [vmem:[#allocation7 + $0x28] sm:$0xff]
    %v305 = vld [vmem:[#allocation7 + $0x30] sm:$0xff]
    %v306 = vld [vmem:[#allocation7 + $0x38] sm:$0xff]
    %v307 = vld [vmem:[#allocation7 + $0x40] sm:$0xff]
    %v308 = vld [vmem:[#allocation7 + $0x48] sm:$0xff]
    %v309 = vld [vmem:[#allocation7 + $0x50] sm:$0xff]
    %v310 = vld [vmem:[#allocation7 + $0x58] sm:$0xff]
    %v311 = vld [vmem:[#allocation7 + $0x60] sm:$0xff]
    %v312 = vld [vmem:[#allocation7 + $0x68] sm:$0xff]
    %v313 = vld [vmem:[#allocation7 + $0x70] sm:$0xff]
    %v314 = vld [vmem:[#allocation7 + $0x78] sm:$0xff]
    %v315 = vld [vmem:[#allocation7 + $0x80] sm:$0xff]
    %v316 = vld [vmem:[#allocation7 + $0x88] sm:$0xff]
    %v317 = vld [vmem:[#allocation7 + $0x90] sm:$0xff]
    %v318 = vld [vmem:[#allocation7 + $0x98] sm:$0xff]
    %v319 = vld [vmem:[#allocation7 + $0xa0] sm:$0xff]
    %v320 = vld [vmem:[#allocation7 + $0xa8] sm:$0xff]
    %v321 = vld [vmem:[#allocation7 + $0xb0] sm:$0xff]
    %v322 = vld [vmem:[#allocation7 + $0xb8] sm:$0xff]
    %v323 = vld [vmem:[#allocation7 + $0xc0] sm:$0xff]
    %v324 = vld [vmem:[#allocation7 + $0xc8] sm:$0xff]
    %v325 = vld [vmem:[#allocation7 + $0xd0] sm:$0xff]
    %v326 = vld [vmem:[#allocation7 + $0xd8] sm:$0xff]
    %v327 = vld [vmem:[#allocation7 + $0xe0] sm:$0xff]
    %v328 = vld [vmem:[#allocation7 + $0xe8] sm:$0xff]
    %v329 = vld [vmem:[#allocation7 + $0xf0] sm:$0xff]
    %v330 = vld [vmem:[#allocation7 + $0xf8] sm:$0xff]
    %v331 = vld [vmem:[#allocation7 + $0x100] sm:$0xff]
    %v332 = vld [vmem:[#allocation7 + $0x108] sm:$0xff]
    %v333 = vld [vmem:[#allocation7 + $0x110] sm:$0xff]
    %v334 = vld [vmem:[#allocation7 + $0x118] sm:$0xff]
    %v335 = vld [vmem:[#allocation7 + $0x120] sm:$0xff]
    %v336 = vld [vmem:[#allocation7 + $0x128] sm:$0xff]
    %v337 = vld [vmem:[#allocation7 + $0x130] sm:$0xff]
    %v338 = vld [vmem:[#allocation7 + $0x138] sm:$0xff]
    %v339 = vld [vmem:[#allocation7 + $0x140] sm:$0xff]
    %v340 = vld [vmem:[#allocation7 + $0x148] sm:$0xff]
    %v341 = vld [vmem:[#allocation7 + $0x150] sm:$0xff]
    %v342 = vld [vmem:[#allocation7 + $0x158] sm:$0xff]
    %v343 = vld [vmem:[#allocation7 + $0x160] sm:$0xff]
    %v344 = vld [vmem:[#allocation7 + $0x168] sm:$0xff]
    %v345 = vld [vmem:[#allocation7 + $0x170] sm:$0xff]
    %v346 = vld [vmem:[#allocation7 + $0x178] sm:$0xff]
    %v347 = vld [vmem:[#allocation7 + $0x180] sm:$0xff]
    %v348 = vld [vmem:[#allocation7 + $0x188] sm:$0xff]
    %v349 = vld [vmem:[#allocation7 + $0x190] sm:$0xff]
    %v350 = vld [vmem:[#allocation7 + $0x198] sm:$0xff]
    %v351 = vld [vmem:[#allocation7 + $0x1a0] sm:$0xff]
    %v352 = vld [vmem:[#allocation7 + $0x1a8] sm:$0xff]
    %v353 = vld [vmem:[#allocation7 + $0x1b0] sm:$0xff]
    %v354 = vld [vmem:[#allocation7 + $0x1b8] sm:$0xff]
    %v355 = vld [vmem:[#allocation7 + $0x1c0] sm:$0xff]
    %v356 = vld [vmem:[#allocation7 + $0x1c8] sm:$0xff]
    %v357 = vld [vmem:[#allocation7 + $0x1d0] sm:$0xff]
    %v358 = vld [vmem:[#allocation7 + $0x1d8] sm:$0xff]
    %v359 = vld [vmem:[#allocation7 + $0x1e0] sm:$0xff]
    %v360 = vld [vmem:[#allocation7 + $0x1e8] sm:$0xff]
    %v361 = vld [vmem:[#allocation7 + $0x1f0] sm:$0xff]
    %v362 = vld [vmem:[#allocation7 + $0x1f8] sm:$0xff]
    %v363 = vld [vmem:[#allocation7 + $0x200] sm:$0xff]
    %v364 = vld [vmem:[#allocation7 + $0x208] sm:$0xff]
    %v365 = vld [vmem:[#allocation7 + $0x210] sm:$0xff]
    %v366 = vld [vmem:[#allocation7 + $0x218] sm:$0xff]
    %v367 = vld [vmem:[#allocation7 + $0x220] sm:$0xff]
    %v368 = vld [vmem:[#allocation7 + $0x228] sm:$0xff]
    %v369 = vld [vmem:[#allocation7 + $0x230] sm:$0xff]
    %v370 = vld [vmem:[#allocation7 + $0x238] sm:$0xff]
    %v371 = vld [vmem:[#allocation7 + $0x240] sm:$0xff]
    %v372 = vld [vmem:[#allocation7 + $0x248] sm:$0xff]
    %v373 = vld [vmem:[#allocation7 + $0x250] sm:$0xff]
    %v374 = vld [vmem:[#allocation7 + $0x258] sm:$0xff]
    %v375 = vld [vmem:[#allocation7 + $0x260] sm:$0xff]
    %v376 = vld [vmem:[#allocation7 + $0x268] sm:$0xff]
    %v377 = vld [vmem:[#allocation7 + $0x270] sm:$0xff]
    %v378 = vld [vmem:[#allocation7 + $0x278] sm:$0xff]
    %v379 = vld [vmem:[#allocation7 + $0x280] sm:$0xff]
    %v380 = vld [vmem:[#allocation7 + $0x288] sm:$0xff]
    %v381 = vld [vmem:[#allocation7 + $0x290] sm:$0xff]
    %v382 = vld [vmem:[#allocation7 + $0x298] sm:$0xff]
    %v383 = vld [vmem:[#allocation7 + $0x2a0] sm:$0xff]
    %v384 = vld [vmem:[#allocation7 + $0x2a8] sm:$0xff]
    %v385 = vld [vmem:[#allocation7 + $0x2b0] sm:$0xff]
    %v386 = vld [vmem:[#allocation7 + $0x2b8] sm:$0xff]
    %v387 = vld [vmem:[#allocation7 + $0x2c0] sm:$0xff]
    %v388 = vld [vmem:[#allocation7 + $0x2c8] sm:$0xff]
    %v389 = vld [vmem:[#allocation7 + $0x2d0] sm:$0xff]
    %v390 = vld [vmem:[#allocation7 + $0x2d8] sm:$0xff]
    %v391 = vld [vmem:[#allocation7 + $0x2e0] sm:$0xff]
    %v392 = vld [vmem:[#allocation7 + $0x2e8] sm:$0xff]
    %v393 = vld [vmem:[#allocation7 + $0x2f0] sm:$0xff]
    %v394 = vld [vmem:[#allocation7 + $0x2f8] sm:$0xff]
    %v395 = vld [vmem:[#allocation7 + $0x300] sm:$0xff]
    %v396 = vld [vmem:[#allocation7 + $0x308] sm:$0xff]
    %v397 = vld [vmem:[#allocation7 + $0x310] sm:$0xff]
    %v398 = vld [vmem:[#allocation7 + $0x318] sm:$0xff]
    %v399 = vld [vmem:[#allocation7 + $0x320] sm:$0xff]
    %v400 = vld [vmem:[#allocation7 + $0x328] sm:$0xff]
    %v401 = vld [vmem:[#allocation7 + $0x330] sm:$0xff]
    %v402 = vld [vmem:[#allocation7 + $0x338] sm:$0xff]
    %v403 = vld [vmem:[#allocation7 + $0x340] sm:$0xff]
    %v404 = vld [vmem:[#allocation7 + $0x348] sm:$0xff]
    %v405 = vld [vmem:[#allocation7 + $0x350] sm:$0xff]
    %v406 = vld [vmem:[#allocation7 + $0x358] sm:$0xff]
    %v407 = vld [vmem:[#allocation7 + $0x360] sm:$0xff]
    %v408 = vld [vmem:[#allocation7 + $0x368] sm:$0xff]
    %v409 = vld [vmem:[#allocation7 + $0x370] sm:$0xff]
    %v410 = vld [vmem:[#allocation7 + $0x378] sm:$0xff]
    %v411 = vld [vmem:[#allocation7 + $0x380] sm:$0xff]
    %v412 = vld [vmem:[#allocation7 + $0x388] sm:$0xff]
    %v413 = vld [vmem:[#allocation7 + $0x390] sm:$0xff]
    %v414 = vld [vmem:[#allocation7 + $0x398] sm:$0xff]
    %v415 = vld [vmem:[#allocation7 + $0x3a0] sm:$0xff]
    %v416 = vld [vmem:[#allocation7 + $0x3a8] sm:$0xff]
    %v417 = vld [vmem:[#allocation7 + $0x3b0] sm:$0xff]
    %v418 = vld [vmem:[#allocation7 + $0x3b8] sm:$0xff]
    %v419 = vld [vmem:[#allocation7 + $0x3c0] sm:$0xff]
    %v420 = vld [vmem:[#allocation7 + $0x3c8] sm:$0xff]
    %v421 = vld [vmem:[#allocation7 + $0x3d0] sm:$0xff]
    %v422 = vld [vmem:[#allocation7 + $0x3d8] sm:$0xff]
    %v423 = vld [vmem:[#allocation7 + $0x3e0] sm:$0xff]
    %v424 = vld [vmem:[#allocation7 + $0x3e8] sm:$0xff]
    %v425 = vld [vmem:[#allocation7 + $0x3f0] sm:$0xff]
    %v426 = vld [vmem:[#allocation7 + $0x3f8] sm:$0xff]
    %v491 = vunpack.c.l.b16 %v363
    %v492 = vunpack.c.h.b16 %v363
    %v493 = vunpack.c.l.b16 %v364
    %v494 = vunpack.c.h.b16 %v364
    %v495 = vunpack.c.l.b16 %v365
    %v496 = vunpack.c.h.b16 %v365
    %v497 = vunpack.c.l.b16 %v366
    %v498 = vunpack.c.h.b16 %v366
    %v499 = vunpack.c.l.b16 %v367
    %v500 = vunpack.c.h.b16 %v367
    %v501 = vunpack.c.l.b16 %v368
    %v502 = vunpack.c.h.b16 %v368
    %v503 = vunpack.c.l.b16 %v369
    %v504 = vunpack.c.h.b16 %v369
    %v505 = vunpack.c.l.b16 %v370
    %v506 = vunpack.c.h.b16 %v370
    %v507 = vunpack.c.l.b16 %v371
    %v508 = vunpack.c.h.b16 %v371
    %v509 = vunpack.c.l.b16 %v372
    %v510 = vunpack.c.h.b16 %v372
    %v511 = vunpack.c.l.b16 %v373
    %v512 = vunpack.c.h.b16 %v373
    %v513 = vunpack.c.l.b16 %v374
    %v514 = vunpack.c.h.b16 %v374
    %v515 = vunpack.c.l.b16 %v375
    %v516 = vunpack.c.h.b16 %v375
    %v517 = vunpack.c.l.b16 %v376
    %v518 = vunpack.c.h.b16 %v376
    %v519 = vunpack.c.l.b16 %v377
    %v520 = vunpack.c.h.b16 %v377
    %v521 = vunpack.c.l.b16 %v378
    %v522 = vunpack.c.h.b16 %v378
    %v523 = vunpack.c.l.b16 %v379
    %v524 = vunpack.c.h.b16 %v379
    %v525 = vunpack.c.l.b16 %v380
    %v526 = vunpack.c.h.b16 %v380
    %v527 = vunpack.c.l.b16 %v381
    %v528 = vunpack.c.h.b16 %v381
    %v529 = vunpack.c.l.b16 %v382
    %v530 = vunpack.c.h.b16 %v382
    %v531 = vunpack.c.l.b16 %v383
    %v532 = vunpack.c.h.b16 %v383
    %v533 = vunpack.c.l.b16 %v384
    %v534 = vunpack.c.h.b16 %v384
    %v535 = vunpack.c.l.b16 %v385
    %v536 = vunpack.c.h.b16 %v385
    %v537 = vunpack.c.l.b16 %v386
    %v538 = vunpack.c.h.b16 %v386
    %v539 = vunpack.c.l.b16 %v387
    %v540 = vunpack.c.h.b16 %v387
    %v541 = vunpack.c.l.b16 %v388
    %v542 = vunpack.c.h.b16 %v388
    %v543 = vunpack.c.l.b16 %v389
    %v544 = vunpack.c.h.b16 %v389
    %v545 = vunpack.c.l.b16 %v390
    %v546 = vunpack.c.h.b16 %v390
    %v547 = vunpack.c.l.b16 %v391
    %v548 = vunpack.c.h.b16 %v391
    %v549 = vunpack.c.l.b16 %v392
    %v550 = vunpack.c.h.b16 %v392
    %v551 = vunpack.c.l.b16 %v393
    %v552 = vunpack.c.h.b16 %v393
    %v553 = vunpack.c.l.b16 %v394
    %v554 = vunpack.c.h.b16 %v394
    %v555 = vunpack.c.l.b16 %v395
    %v556 = vunpack.c.h.b16 %v395
    %v557 = vunpack.c.l.b16 %v396
    %v558 = vunpack.c.h.b16 %v396
    %v559 = vunpack.c.l.b16 %v397
    %v560 = vunpack.c.h.b16 %v397
    %v561 = vunpack.c.l.b16 %v398
    %v562 = vunpack.c.h.b16 %v398
    %v563 = vunpack.c.l.b16 %v399
    %v564 = vunpack.c.h.b16 %v399
    %v565 = vunpack.c.l.b16 %v400
    %v566 = vunpack.c.h.b16 %v400
    %v567 = vunpack.c.l.b16 %v401
    %v568 = vunpack.c.h.b16 %v401
    %v569 = vunpack.c.l.b16 %v402
    %v570 = vunpack.c.h.b16 %v402
    %v571 = vunpack.c.l.b16 %v403
    %v572 = vunpack.c.h.b16 %v403
    %v573 = vunpack.c.l.b16 %v404
    %v574 = vunpack.c.h.b16 %v404
    %v575 = vunpack.c.l.b16 %v405
    %v576 = vunpack.c.h.b16 %v405
    %v577 = vunpack.c.l.b16 %v406
    %v578 = vunpack.c.h.b16 %v406
    %v579 = vunpack.c.l.b16 %v407
    %v580 = vunpack.c.h.b16 %v407
    %v581 = vunpack.c.l.b16 %v408
    %v582 = vunpack.c.h.b16 %v408
    %v583 = vunpack.c.l.b16 %v409
    %v584 = vunpack.c.h.b16 %v409
    %v585 = vunpack.c.l.b16 %v410
    %v586 = vunpack.c.h.b16 %v410
    %v587 = vunpack.c.l.b16 %v411
    %v588 = vunpack.c.h.b16 %v411
    %v589 = vunpack.c.l.b16 %v412
    %v590 = vunpack.c.h.b16 %v412
    %v591 = vunpack.c.l.b16 %v413
    %v592 = vunpack.c.h.b16 %v413
    %v593 = vunpack.c.l.b16 %v414
    %v594 = vunpack.c.h.b16 %v414
    %v595 = vunpack.c.l.b16 %v415
    %v596 = vunpack.c.h.b16 %v415
    %v597 = vunpack.c.l.b16 %v416
    %v598 = vunpack.c.h.b16 %v416
    %v599 = vunpack.c.l.b16 %v417
    %v600 = vunpack.c.h.b16 %v417
    %v601 = vunpack.c.l.b16 %v418
    %v602 = vunpack.c.h.b16 %v418
    %v603 = vunpack.c.l.b16 %v419
    %v604 = vunpack.c.h.b16 %v419
    %v605 = vunpack.c.l.b16 %v420
    %v606 = vunpack.c.h.b16 %v420
    %v607 = vunpack.c.l.b16 %v421
    %v608 = vunpack.c.h.b16 %v421
    %v609 = vunpack.c.l.b16 %v422
    %v610 = vunpack.c.h.b16 %v422
    %v611 = vunpack.c.l.b16 %v423
    %v612 = vunpack.c.h.b16 %v423
    %v613 = vunpack.c.l.b16 %v424
    %v614 = vunpack.c.h.b16 %v424
    %v615 = vunpack.c.l.b16 %v425
    %v616 = vunpack.c.h.b16 %v425
    %v617 = vunpack.c.l.b16 %v426
    %v618 = vunpack.c.h.b16 %v426
    %v619 = vpack.c.b16 %v495, %v491
    %v620 = vpack.c.b16 %v496, %v492
    %v621 = vpack.c.b16 %v497, %v493
    %v622 = vpack.c.b16 %v498, %v494
    %v623 = vpack.c.b16 %v503, %v499
    %v624 = vpack.c.b16 %v504, %v500
    %v625 = vpack.c.b16 %v505, %v501
    %v626 = vpack.c.b16 %v506, %v502
    %v627 = vpack.c.b16 %v511, %v507
    %v628 = vpack.c.b16 %v512, %v508
    %v629 = vpack.c.b16 %v513, %v509
    %v630 = vpack.c.b16 %v514, %v510
    %v631 = vpack.c.b16 %v519, %v515
    %v632 = vpack.c.b16 %v520, %v516
    %v633 = vpack.c.b16 %v521, %v517
    %v634 = vpack.c.b16 %v522, %v518
    %v635 = vpack.c.b16 %v527, %v523
    %v636 = vpack.c.b16 %v528, %v524
    %v637 = vpack.c.b16 %v529, %v525
    %v638 = vpack.c.b16 %v530, %v526
    %v639 = vpack.c.b16 %v535, %v531
    %v640 = vpack.c.b16 %v536, %v532
    %v641 = vpack.c.b16 %v537, %v533
    %v642 = vpack.c.b16 %v538, %v534
    %v643 = vpack.c.b16 %v543, %v539
    %v644 = vpack.c.b16 %v544, %v540
    %v645 = vpack.c.b16 %v545, %v541
    %v646 = vpack.c.b16 %v546, %v542
    %v647 = vpack.c.b16 %v551, %v547
    %v648 = vpack.c.b16 %v552, %v548
    %v649 = vpack.c.b16 %v553, %v549
    %v650 = vpack.c.b16 %v554, %v550
    %v651 = vpack.c.b16 %v559, %v555
    %v652 = vpack.c.b16 %v560, %v556
    %v653 = vpack.c.b16 %v561, %v557
    %v654 = vpack.c.b16 %v562, %v558
    %v655 = vpack.c.b16 %v567, %v563
    %v656 = vpack.c.b16 %v568, %v564
    %v657 = vpack.c.b16 %v569, %v565
    %v658 = vpack.c.b16 %v570, %v566
    %v659 = vpack.c.b16 %v575, %v571
    %v660 = vpack.c.b16 %v576, %v572
    %v661 = vpack.c.b16 %v577, %v573
    %v662 = vpack.c.b16 %v578, %v574
    %v663 = vpack.c.b16 %v583, %v579
    %v664 = vpack.c.b16 %v584, %v580
    %v665 = vpack.c.b16 %v585, %v581
    %v666 = vpack.c.b16 %v586, %v582
    %v667 = vpack.c.b16 %v591, %v587
    %v668 = vpack.c.b16 %v592, %v588
    %v669 = vpack.c.b16 %v593, %v589
    %v670 = vpack.c.b16 %v594, %v590
    %v671 = vpack.c.b16 %v599, %v595
    %v672 = vpack.c.b16 %v600, %v596
    %v673 = vpack.c.b16 %v601, %v597
    %v674 = vpack.c.b16 %v602, %v598
    %v675 = vpack.c.b16 %v607, %v603
    %v676 = vpack.c.b16 %v608, %v604
    %v677 = vpack.c.b16 %v609, %v605
    %v678 = vpack.c.b16 %v610, %v606
    %v679 = vpack.c.b16 %v615, %v611
    %v680 = vpack.c.b16 %v616, %v612
    %v681 = vpack.c.b16 %v617, %v613
    %v682 = vpack.c.b16 %v618, %v614
    %747 = vmatprep.subr.bf16.mxu0 %v620
    %748 = vmatpush1.bf16.msra.mxu0 %v619
    %749 = vmatprep.subr.bf16.mxu0 %v624
    %750 = vmatpush1.bf16.msra.mxu0 %v623
    %751 = vmatprep.subr.bf16.mxu0 %v628
    %752 = vmatpush1.bf16.msra.mxu0 %v627
    %753 = vmatprep.subr.bf16.mxu0 %v632
    %754 = vmatpush1.bf16.msra.mxu0 %v631
    %755 = vmatprep.subr.bf16.mxu0 %v636
    %756 = vmatpush1.bf16.msra.mxu0 %v635
    %757 = vmatprep.subr.bf16.mxu0 %v640
    %758 = vmatpush1.bf16.msra.mxu0 %v639
    %759 = vmatprep.subr.bf16.mxu0 %v644
    %760 = vmatpush1.bf16.msra.mxu0 %v643
    %761 = vmatprep.subr.bf16.mxu0 %v648
    %762 = vmatpush1.bf16.msra.mxu0 %v647
    %763 = vmatprep.subr.bf16.mxu0 %v652
    %764 = vmatpush1.bf16.msra.mxu0 %v651
    %765 = vmatprep.subr.bf16.mxu0 %v656
    %766 = vmatpush1.bf16.msra.mxu0 %v655
    %767 = vmatprep.subr.bf16.mxu0 %v660
    %768 = vmatpush1.bf16.msra.mxu0 %v659
    %769 = vmatprep.subr.bf16.mxu0 %v664
    %770 = vmatpush1.bf16.msra.mxu0 %v663
    %771 = vmatprep.subr.bf16.mxu0 %v668
    %772 = vmatpush1.bf16.msra.mxu0 %v667
    %773 = vmatprep.subr.bf16.mxu0 %v672
    %774 = vmatpush1.bf16.msra.mxu0 %v671
    %775 = vmatprep.subr.bf16.mxu0 %v676
    %776 = vmatpush1.bf16.msra.mxu0 %v675
    %777 = vmatprep.subr.bf16.mxu0 %v680
    %778 = vmatpush1.bf16.msra.mxu0 %v679
    %779 = vmatprep.mubr.bf16.mxu0 %v296
    %780 = vmatmul.mubr.bf16.gmra.mrb[0].mxu0 %v295
    %v781 = vpop.f32.mrb[0].mxu0
    %v782 = vadd.f32 0.0, %v781
    %v783 = vpop.f32.mrb[0].mxu0
    %v784 = vadd.f32 0.0, %v783
    %v785 = vpop.f32.mrb[0].mxu0
    %v786 = vadd.f32 0.0, %v785
    %v787 = vpop.f32.mrb[0].mxu0
    %v788 = vadd.f32 0.0, %v787
    %789 = vdwg.mxu0
    %790 = vmatprep.subr.bf16.mxu0 %v622
    %791 = vmatpush1.bf16.msra.mxu0 %v621
    %792 = vmatprep.subr.bf16.mxu0 %v626
    %793 = vmatpush1.bf16.msra.mxu0 %v625
    %794 = vmatprep.subr.bf16.mxu0 %v630
    %795 = vmatpush1.bf16.msra.mxu0 %v629
    %796 = vmatprep.subr.bf16.mxu0 %v634
    %797 = vmatpush1.bf16.msra.mxu0 %v633
    %798 = vmatprep.subr.bf16.mxu0 %v638
    %799 = vmatpush1.bf16.msra.mxu0 %v637
    %800 = vmatprep.subr.bf16.mxu0 %v642
    %801 = vmatpush1.bf16.msra.mxu0 %v641
    %802 = vmatprep.subr.bf16.mxu0 %v646
    %803 = vmatpush1.bf16.msra.mxu0 %v645
    %804 = vmatprep.subr.bf16.mxu0 %v650
    %805 = vmatpush1.bf16.msra.mxu0 %v649
    %806 = vmatprep.subr.bf16.mxu0 %v654
    %807 = vmatpush1.bf16.msra.mxu0 %v653
    %808 = vmatprep.subr.bf16.mxu0 %v658
    %809 = vmatpush1.bf16.msra.mxu0 %v657
    %810 = vmatprep.subr.bf16.mxu0 %v662
    %811 = vmatpush1.bf16.msra.mxu0 %v661
    %812 = vmatprep.subr.bf16.mxu0 %v666
    %813 = vmatpush1.bf16.msra.mxu0 %v665
    %814 = vmatprep.subr.bf16.mxu0 %v670
    %815 = vmatpush1.bf16.msra.mxu0 %v669
    %816 = vmatprep.subr.bf16.mxu0 %v674
    %817 = vmatpush1.bf16.msra.mxu0 %v673
    %818 = vmatprep.subr.bf16.mxu0 %v678
    %819 = vmatpush1.bf16.msra.mxu0 %v677
    %820 = vmatprep.subr.bf16.mxu0 %v682
    %821 = vmatpush1.bf16.msra.mxu0 %v681
    %822 = vmatprep.mubr.bf16.mxu0 %v296
    %823 = vmatmul.mubr.bf16.gmra.mrb[0].mxu0 %v295
    %v824 = vpop.f32.mrb[0].mxu0
    %v825 = vadd.f32 0.0, %v824
    %v826 = vpop.f32.mrb[0].mxu0
    %v827 = vadd.f32 0.0, %v826
    %v828 = vpop.f32.mrb[0].mxu0
    %v829 = vadd.f32 0.0, %v828
    %v830 = vpop.f32.mrb[0].mxu0
    %v831 = vadd.f32 0.0, %v830
    %832 = vdwg.mxu0
    %v897 = vunpack.c.l.b16 %v299
    %v898 = vunpack.c.h.b16 %v299
    %v899 = vunpack.c.l.b16 %v300
    %v900 = vunpack.c.h.b16 %v300
    %v901 = vunpack.c.l.b16 %v301
    %v902 = vunpack.c.h.b16 %v301
    %v903 = vunpack.c.l.b16 %v302
    %v904 = vunpack.c.h.b16 %v302
    %v905 = vunpack.c.l.b16 %v303
    %v906 = vunpack.c.h.b16 %v303
    %v907 = vunpack.c.l.b16 %v304
    %v908 = vunpack.c.h.b16 %v304
    %v909 = vunpack.c.l.b16 %v305
    %v910 = vunpack.c.h.b16 %v305
    %v911 = vunpack.c.l.b16 %v306
    %v912 = vunpack.c.h.b16 %v306
    %v913 = vunpack.c.l.b16 %v307
    %v914 = vunpack.c.h.b16 %v307
    %v915 = vunpack.c.l.b16 %v308
    %v916 = vunpack.c.h.b16 %v308
    %v917 = vunpack.c.l.b16 %v309
    %v918 = vunpack.c.h.b16 %v309
    %v919 = vunpack.c.l.b16 %v310
    %v920 = vunpack.c.h.b16 %v310
    %v921 = vunpack.c.l.b16 %v311
    %v922 = vunpack.c.h.b16 %v311
    %v923 = vunpack.c.l.b16 %v312
    %v924 = vunpack.c.h.b16 %v312
    %v925 = vunpack.c.l.b16 %v313
    %v926 = vunpack.c.h.b16 %v313
    %v927 = vunpack.c.l.b16 %v314
    %v928 = vunpack.c.h.b16 %v314
    %v929 = vunpack.c.l.b16 %v315
    %v930 = vunpack.c.h.b16 %v315
    %v931 = vunpack.c.l.b16 %v316
    %v932 = vunpack.c.h.b16 %v316
    %v933 = vunpack.c.l.b16 %v317
    %v934 = vunpack.c.h.b16 %v317
    %v935 = vunpack.c.l.b16 %v318
    %v936 = vunpack.c.h.b16 %v318
    %v937 = vunpack.c.l.b16 %v319
    %v938 = vunpack.c.h.b16 %v319
    %v939 = vunpack.c.l.b16 %v320
    %v940 = vunpack.c.h.b16 %v320
    %v941 = vunpack.c.l.b16 %v321
    %v942 = vunpack.c.h.b16 %v321
    %v943 = vunpack.c.l.b16 %v322
    %v944 = vunpack.c.h.b16 %v322
    %v945 = vunpack.c.l.b16 %v323
    %v946 = vunpack.c.h.b16 %v323
    %v947 = vunpack.c.l.b16 %v324
    %v948 = vunpack.c.h.b16 %v324
    %v949 = vunpack.c.l.b16 %v325
    %v950 = vunpack.c.h.b16 %v325
    %v951 = vunpack.c.l.b16 %v326
    %v952 = vunpack.c.h.b16 %v326
    %v953 = vunpack.c.l.b16 %v327
    %v954 = vunpack.c.h.b16 %v327
    %v955 = vunpack.c.l.b16 %v328
    %v956 = vunpack.c.h.b16 %v328
    %v957 = vunpack.c.l.b16 %v329
    %v958 = vunpack.c.h.b16 %v329
    %v959 = vunpack.c.l.b16 %v330
    %v960 = vunpack.c.h.b16 %v330
    %v961 = vunpack.c.l.b16 %v331
    %v962 = vunpack.c.h.b16 %v331
    %v963 = vunpack.c.l.b16 %v332
    %v964 = vunpack.c.h.b16 %v332
    %v965 = vunpack.c.l.b16 %v333
    %v966 = vunpack.c.h.b16 %v333
    %v967 = vunpack.c.l.b16 %v334
    %v968 = vunpack.c.h.b16 %v334
    %v969 = vunpack.c.l.b16 %v335
    %v970 = vunpack.c.h.b16 %v335
    %v971 = vunpack.c.l.b16 %v336
    %v972 = vunpack.c.h.b16 %v336
    %v973 = vunpack.c.l.b16 %v337
    %v974 = vunpack.c.h.b16 %v337
    %v975 = vunpack.c.l.b16 %v338
    %v976 = vunpack.c.h.b16 %v338
    %v977 = vunpack.c.l.b16 %v339
    %v978 = vunpack.c.h.b16 %v339
    %v979 = vunpack.c.l.b16 %v340
    %v980 = vunpack.c.h.b16 %v340
    %v981 = vunpack.c.l.b16 %v341
    %v982 = vunpack.c.h.b16 %v341
    %v983 = vunpack.c.l.b16 %v342
    %v984 = vunpack.c.h.b16 %v342
    %v985 = vunpack.c.l.b16 %v343
    %v986 = vunpack.c.h.b16 %v343
    %v987 = vunpack.c.l.b16 %v344
    %v988 = vunpack.c.h.b16 %v344
    %v989 = vunpack.c.l.b16 %v345
    %v990 = vunpack.c.h.b16 %v345
    %v991 = vunpack.c.l.b16 %v346
    %v992 = vunpack.c.h.b16 %v346
    %v993 = vunpack.c.l.b16 %v347
    %v994 = vunpack.c.h.b16 %v347
    %v995 = vunpack.c.l.b16 %v348
    %v996 = vunpack.c.h.b16 %v348
    %v997 = vunpack.c.l.b16 %v349
    %v998 = vunpack.c.h.b16 %v349
    %v999 = vunpack.c.l.b16 %v350
    %v1000 = vunpack.c.h.b16 %v350
    %v1001 = vunpack.c.l.b16 %v351
    %v1002 = vunpack.c.h.b16 %v351
    %v1003 = vunpack.c.l.b16 %v352
    %v1004 = vunpack.c.h.b16 %v352
    %v1005 = vunpack.c.l.b16 %v353
    %v1006 = vunpack.c.h.b16 %v353
    %v1007 = vunpack.c.l.b16 %v354
    %v1008 = vunpack.c.h.b16 %v354
    %v1009 = vunpack.c.l.b16 %v355
    %v1010 = vunpack.c.h.b16 %v355
    %v1011 = vunpack.c.l.b16 %v356
    %v1012 = vunpack.c.h.b16 %v356
    %v1013 = vunpack.c.l.b16 %v357
    %v1014 = vunpack.c.h.b16 %v357
    %v1015 = vunpack.c.l.b16 %v358
    %v1016 = vunpack.c.h.b16 %v358
    %v1017 = vunpack.c.l.b16 %v359
    %v1018 = vunpack.c.h.b16 %v359
    %v1019 = vunpack.c.l.b16 %v360
    %v1020 = vunpack.c.h.b16 %v360
    %v1021 = vunpack.c.l.b16 %v361
    %v1022 = vunpack.c.h.b16 %v361
    %v1023 = vunpack.c.l.b16 %v362
    %v1024 = vunpack.c.h.b16 %v362
    %v1025 = vpack.c.b16 %v901, %v897
    %v1026 = vpack.c.b16 %v902, %v898
    %v1027 = vpack.c.b16 %v903, %v899
    %v1028 = vpack.c.b16 %v904, %v900
    %v1029 = vpack.c.b16 %v909, %v905
    %v1030 = vpack.c.b16 %v910, %v906
    %v1031 = vpack.c.b16 %v911, %v907
    %v1032 = vpack.c.b16 %v912, %v908
    %v1033 = vpack.c.b16 %v917, %v913
    %v1034 = vpack.c.b16 %v918, %v914
    %v1035 = vpack.c.b16 %v919, %v915
    %v1036 = vpack.c.b16 %v920, %v916
    %v1037 = vpack.c.b16 %v925, %v921
    %v1038 = vpack.c.b16 %v926, %v922
    %v1039 = vpack.c.b16 %v927, %v923
    %v1040 = vpack.c.b16 %v928, %v924
    %v1041 = vpack.c.b16 %v933, %v929
    %v1042 = vpack.c.b16 %v934, %v930
    %v1043 = vpack.c.b16 %v935, %v931
    %v1044 = vpack.c.b16 %v936, %v932
    %v1045 = vpack.c.b16 %v941, %v937
    %v1046 = vpack.c.b16 %v942, %v938
    %v1047 = vpack.c.b16 %v943, %v939
    %v1048 = vpack.c.b16 %v944, %v940
    %v1049 = vpack.c.b16 %v949, %v945
    %v1050 = vpack.c.b16 %v950, %v946
    %v1051 = vpack.c.b16 %v951, %v947
    %v1052 = vpack.c.b16 %v952, %v948
    %v1053 = vpack.c.b16 %v957, %v953
    %v1054 = vpack.c.b16 %v958, %v954
    %v1055 = vpack.c.b16 %v959, %v955
    %v1056 = vpack.c.b16 %v960, %v956
    %v1057 = vpack.c.b16 %v965, %v961
    %v1058 = vpack.c.b16 %v966, %v962
    %v1059 = vpack.c.b16 %v967, %v963
    %v1060 = vpack.c.b16 %v968, %v964
    %v1061 = vpack.c.b16 %v973, %v969
    %v1062 = vpack.c.b16 %v974, %v970
    %v1063 = vpack.c.b16 %v975, %v971
    %v1064 = vpack.c.b16 %v976, %v972
    %v1065 = vpack.c.b16 %v981, %v977
    %v1066 = vpack.c.b16 %v982, %v978
    %v1067 = vpack.c.b16 %v983, %v979
    %v1068 = vpack.c.b16 %v984, %v980
    %v1069 = vpack.c.b16 %v989, %v985
    %v1070 = vpack.c.b16 %v990, %v986
    %v1071 = vpack.c.b16 %v991, %v987
    %v1072 = vpack.c.b16 %v992, %v988
    %v1073 = vpack.c.b16 %v997, %v993
    %v1074 = vpack.c.b16 %v998, %v994
    %v1075 = vpack.c.b16 %v999, %v995
    %v1076 = vpack.c.b16 %v1000, %v996
    %v1077 = vpack.c.b16 %v1005, %v1001
    %v1078 = vpack.c.b16 %v1006, %v1002
    %v1079 = vpack.c.b16 %v1007, %v1003
    %v1080 = vpack.c.b16 %v1008, %v1004
    %v1081 = vpack.c.b16 %v1013, %v1009
    %v1082 = vpack.c.b16 %v1014, %v1010
    %v1083 = vpack.c.b16 %v1015, %v1011
    %v1084 = vpack.c.b16 %v1016, %v1012
    %v1085 = vpack.c.b16 %v1021, %v1017
    %v1086 = vpack.c.b16 %v1022, %v1018
    %v1087 = vpack.c.b16 %v1023, %v1019
    %v1088 = vpack.c.b16 %v1024, %v1020
    %1153 = vmatprep.subr.bf16.mxu0 %v1026
    %1154 = vmatpush1.bf16.msra.mxu0 %v1025
    %1155 = vmatprep.subr.bf16.mxu0 %v1030
    %1156 = vmatpush1.bf16.msra.mxu0 %v1029
    %1157 = vmatprep.subr.bf16.mxu0 %v1034
    %1158 = vmatpush1.bf16.msra.mxu0 %v1033
    %1159 = vmatprep.subr.bf16.mxu0 %v1038
    %1160 = vmatpush1.bf16.msra.mxu0 %v1037
    %1161 = vmatprep.subr.bf16.mxu0 %v1042
    %1162 = vmatpush1.bf16.msra.mxu0 %v1041
    %1163 = vmatprep.subr.bf16.mxu0 %v1046
    %1164 = vmatpush1.bf16.msra.mxu0 %v1045
    %1165 = vmatprep.subr.bf16.mxu0 %v1050
    %1166 = vmatpush1.bf16.msra.mxu0 %v1049
    %1167 = vmatprep.subr.bf16.mxu0 %v1054
    %1168 = vmatpush1.bf16.msra.mxu0 %v1053
    %1169 = vmatprep.subr.bf16.mxu0 %v1058
    %1170 = vmatpush1.bf16.msra.mxu0 %v1057
    %1171 = vmatprep.subr.bf16.mxu0 %v1062
    %1172 = vmatpush1.bf16.msra.mxu0 %v1061
    %1173 = vmatprep.subr.bf16.mxu0 %v1066
    %1174 = vmatpush1.bf16.msra.mxu0 %v1065
    %1175 = vmatprep.subr.bf16.mxu0 %v1070
    %1176 = vmatpush1.bf16.msra.mxu0 %v1069
    %1177 = vmatprep.subr.bf16.mxu0 %v1074
    %1178 = vmatpush1.bf16.msra.mxu0 %v1073
    %1179 = vmatprep.subr.bf16.mxu0 %v1078
    %1180 = vmatpush1.bf16.msra.mxu0 %v1077
    %1181 = vmatprep.subr.bf16.mxu0 %v1082
    %1182 = vmatpush1.bf16.msra.mxu0 %v1081
    %1183 = vmatprep.subr.bf16.mxu0 %v1086
    %1184 = vmatpush1.bf16.msra.mxu0 %v1085
    %1185 = vmatprep.mubr.bf16.mxu0 %v294
    %1186 = vmatmul.mubr.bf16.gmra.mrb[0].mxu0 %v293
    %v1187 = vpop.f32.mrb[0].mxu0
    %v1188 = vadd.f32 %v782, %v1187
    %v1189 = vpop.f32.mrb[0].mxu0
    %v1190 = vadd.f32 %v784, %v1189
    %v1191 = vpop.f32.mrb[0].mxu0
    %v1192 = vadd.f32 %v786, %v1191
    %v1193 = vpop.f32.mrb[0].mxu0
    %v1194 = vadd.f32 %v788, %v1193
    %1195 = vdwg.mxu0
    %1196 = vmatprep.subr.bf16.mxu0 %v1028
    %1197 = vmatpush1.bf16.msra.mxu0 %v1027
    %1198 = vmatprep.subr.bf16.mxu0 %v1032
    %1199 = vmatpush1.bf16.msra.mxu0 %v1031
    %1200 = vmatprep.subr.bf16.mxu0 %v1036
    %1201 = vmatpush1.bf16.msra.mxu0 %v1035
    %1202 = vmatprep.subr.bf16.mxu0 %v1040
    %1203 = vmatpush1.bf16.msra.mxu0 %v1039
    %1204 = vmatprep.subr.bf16.mxu0 %v1044
    %1205 = vmatpush1.bf16.msra.mxu0 %v1043
    %1206 = vmatprep.subr.bf16.mxu0 %v1048
    %1207 = vmatpush1.bf16.msra.mxu0 %v1047
    %1208 = vmatprep.subr.bf16.mxu0 %v1052
    %1209 = vmatpush1.bf16.msra.mxu0 %v1051
    %1210 = vmatprep.subr.bf16.mxu0 %v1056
    %1211 = vmatpush1.bf16.msra.mxu0 %v1055
    %1212 = vmatprep.subr.bf16.mxu0 %v1060
    %1213 = vmatpush1.bf16.msra.mxu0 %v1059
    %1214 = vmatprep.subr.bf16.mxu0 %v1064
    %1215 = vmatpush1.bf16.msra.mxu0 %v1063
    %1216 = vmatprep.subr.bf16.mxu0 %v1068
    %1217 = vmatpush1.bf16.msra.mxu0 %v1067
    %1218 = vmatprep.subr.bf16.mxu0 %v1072
    %1219 = vmatpush1.bf16.msra.mxu0 %v1071
    %1220 = vmatprep.subr.bf16.mxu0 %v1076
    %1221 = vmatpush1.bf16.msra.mxu0 %v1075
    %1222 = vmatprep.subr.bf16.mxu0 %v1080
    %1223 = vmatpush1.bf16.msra.mxu0 %v1079
    %1224 = vmatprep.subr.bf16.mxu0 %v1084
    %1225 = vmatpush1.bf16.msra.mxu0 %v1083
    %1226 = vmatprep.subr.bf16.mxu0 %v1088
    %1227 = vmatpush1.bf16.msra.mxu0 %v1087
    %1228 = vmatprep.mubr.bf16.mxu0 %v294
    %1229 = vmatmul.mubr.bf16.gmra.mrb[0].mxu0 %v293
    %v1230 = vpop.f32.mrb[0].mxu0
    %v1231 = vadd.f32 %v825, %v1230
    %v1232 = vpop.f32.mrb[0].mxu0
    %v1233 = vadd.f32 %v827, %v1232
    %v1234 = vpop.f32.mrb[0].mxu0
    %v1235 = vadd.f32 %v829, %v1234
    %v1236 = vpop.f32.mrb[0].mxu0
    %v1237 = vadd.f32 %v831, %v1236
    %1238 = vdwg.mxu0
    %v1239 = vld [vmem:[#allocation7 + $0x400] sm:$0xff]
    %v1240 = vld [vmem:[#allocation7 + $0x408] sm:$0xff]
    %v1241 = vld [vmem:[#allocation7 + $0x410] sm:$0xff]
    %v1242 = vld [vmem:[#allocation7 + $0x418] sm:$0xff]
    %v1243 = vld [vmem:[#allocation7 + $0x420] sm:$0xff]
    %v1244 = vld [vmem:[#allocation7 + $0x428] sm:$0xff]
    %v1245 = vld [vmem:[#allocation7 + $0x430] sm:$0xff]
    %v1246 = vld [vmem:[#allocation7 + $0x438] sm:$0xff]
    %v1247 = vld [vmem:[#allocation7 + $0x440] sm:$0xff]
    %v1248 = vld [vmem:[#allocation7 + $0x448] sm:$0xff]
    %v1249 = vld [vmem:[#allocation7 + $0x450] sm:$0xff]
    %v1250 = vld [vmem:[#allocation7 + $0x458] sm:$0xff]
    %v1251 = vld [vmem:[#allocation7 + $0x460] sm:$0xff]
    %v1252 = vld [vmem:[#allocation7 + $0x468] sm:$0xff]
    %v1253 = vld [vmem:[#allocation7 + $0x470] sm:$0xff]
    %v1254 = vld [vmem:[#allocation7 + $0x478] sm:$0xff]
    %v1255 = vld [vmem:[#allocation7 + $0x480] sm:$0xff]
    %v1256 = vld [vmem:[#allocation7 + $0x488] sm:$0xff]
    %v1257 = vld [vmem:[#allocation7 + $0x490] sm:$0xff]
    %v1258 = vld [vmem:[#allocation7 + $0x498] sm:$0xff]
    %v1259 = vld [vmem:[#allocation7 + $0x4a0] sm:$0xff]
    %v1260 = vld [vmem:[#allocation7 + $0x4a8] sm:$0xff]
    %v1261 = vld [vmem:[#allocation7 + $0x4b0] sm:$0xff]
    %v1262 = vld [vmem:[#allocation7 + $0x4b8] sm:$0xff]
    %v1263 = vld [vmem:[#allocation7 + $0x4c0] sm:$0xff]
    %v1264 = vld [vmem:[#allocation7 + $0x4c8] sm:$0xff]
    %v1265 = vld [vmem:[#allocation7 + $0x4d0] sm:$0xff]
    %v1266 = vld [vmem:[#allocation7 + $0x4d8] sm:$0xff]
    %v1267 = vld [vmem:[#allocation7 + $0x4e0] sm:$0xff]
    %v1268 = vld [vmem:[#allocation7 + $0x4e8] sm:$0xff]
    %v1269 = vld [vmem:[#allocation7 + $0x4f0] sm:$0xff]
    %v1270 = vld [vmem:[#allocation7 + $0x4f8] sm:$0xff]
    %v1271 = vld [vmem:[#allocation7 + $0x500] sm:$0xff]
    %v1272 = vld [vmem:[#allocation7 + $0x508] sm:$0xff]
    %v1273 = vld [vmem:[#allocation7 + $0x510] sm:$0xff]
    %v1274 = vld [vmem:[#allocation7 + $0x518] sm:$0xff]
    %v1275 = vld [vmem:[#allocation7 + $0x520] sm:$0xff]
    %v1276 = vld [vmem:[#allocation7 + $0x528] sm:$0xff]
    %v1277 = vld [vmem:[#allocation7 + $0x530] sm:$0xff]
    %v1278 = vld [vmem:[#allocation7 + $0x538] sm:$0xff]
    %v1279 = vld [vmem:[#allocation7 + $0x540] sm:$0xff]
    %v1280 = vld [vmem:[#allocation7 + $0x548] sm:$0xff]
    %v1281 = vld [vmem:[#allocation7 + $0x550] sm:$0xff]
    %v1282 = vld [vmem:[#allocation7 + $0x558] sm:$0xff]
    %v1283 = vld [vmem:[#allocation7 + $0x560] sm:$0xff]
    %v1284 = vld [vmem:[#allocation7 + $0x568] sm:$0xff]
    %v1285 = vld [vmem:[#allocation7 + $0x570] sm:$0xff]
    %v1286 = vld [vmem:[#allocation7 + $0x578] sm:$0xff]
    %v1287 = vld [vmem:[#allocation7 + $0x580] sm:$0xff]
    %v1288 = vld [vmem:[#allocation7 + $0x588] sm:$0xff]
    %v1289 = vld [vmem:[#allocation7 + $0x590] sm:$0xff]
    %v1290 = vld [vmem:[#allocation7 + $0x598] sm:$0xff]
    %v1291 = vld [vmem:[#allocation7 + $0x5a0] sm:$0xff]
    %v1292 = vld [vmem:[#allocation7 + $0x5a8] sm:$0xff]
    %v1293 = vld [vmem:[#allocation7 + $0x5b0] sm:$0xff]
    %v1294 = vld [vmem:[#allocation7 + $0x5b8] sm:$0xff]
    %v1295 = vld [vmem:[#allocation7 + $0x5c0] sm:$0xff]
    %v1296 = vld [vmem:[#allocation7 + $0x5c8] sm:$0xff]
    %v1297 = vld [vmem:[#allocation7 + $0x5d0] sm:$0xff]
    %v1298 = vld [vmem:[#allocation7 + $0x5d8] sm:$0xff]
    %v1299 = vld [vmem:[#allocation7 + $0x5e0] sm:$0xff]
    %v1300 = vld [vmem:[#allocation7 + $0x5e8] sm:$0xff]
    %v1301 = vld [vmem:[#allocation7 + $0x5f0] sm:$0xff]
    %v1302 = vld [vmem:[#allocation7 + $0x5f8] sm:$0xff]
    %v1367 = vunpack.c.l.b16 %v1239
    %v1368 = vunpack.c.h.b16 %v1239
    %v1369 = vunpack.c.l.b16 %v1240
    %v1370 = vunpack.c.h.b16 %v1240
    %v1371 = vunpack.c.l.b16 %v1241
    %v1372 = vunpack.c.h.b16 %v1241
    %v1373 = vunpack.c.l.b16 %v1242
    %v1374 = vunpack.c.h.b16 %v1242
    %v1375 = vunpack.c.l.b16 %v1243
    %v1376 = vunpack.c.h.b16 %v1243
    %v1377 = vunpack.c.l.b16 %v1244
    %v1378 = vunpack.c.h.b16 %v1244
    %v1379 = vunpack.c.l.b16 %v1245
    %v1380 = vunpack.c.h.b16 %v1245
    %v1381 = vunpack.c.l.b16 %v1246
    %v1382 = vunpack.c.h.b16 %v1246
    %v1383 = vunpack.c.l.b16 %v1247
    %v1384 = vunpack.c.h.b16 %v1247
    %v1385 = vunpack.c.l.b16 %v1248
    %v1386 = vunpack.c.h.b16 %v1248
    %v1387 = vunpack.c.l.b16 %v1249
    %v1388 = vunpack.c.h.b16 %v1249
    %v1389 = vunpack.c.l.b16 %v1250
    %v1390 = vunpack.c.h.b16 %v1250
    %v1391 = vunpack.c.l.b16 %v1251
    %v1392 = vunpack.c.h.b16 %v1251
    %v1393 = vunpack.c.l.b16 %v1252
    %v1394 = vunpack.c.h.b16 %v1252
    %v1395 = vunpack.c.l.b16 %v1253
    %v1396 = vunpack.c.h.b16 %v1253
    %v1397 = vunpack.c.l.b16 %v1254
    %v1398 = vunpack.c.h.b16 %v1254
    %v1399 = vunpack.c.l.b16 %v1255
    %v1400 = vunpack.c.h.b16 %v1255
    %v1401 = vunpack.c.l.b16 %v1256
    %v1402 = vunpack.c.h.b16 %v1256
    %v1403 = vunpack.c.l.b16 %v1257
    %v1404 = vunpack.c.h.b16 %v1257
    %v1405 = vunpack.c.l.b16 %v1258
    %v1406 = vunpack.c.h.b16 %v1258
    %v1407 = vunpack.c.l.b16 %v1259
    %v1408 = vunpack.c.h.b16 %v1259
    %v1409 = vunpack.c.l.b16 %v1260
    %v1410 = vunpack.c.h.b16 %v1260
    %v1411 = vunpack.c.l.b16 %v1261
    %v1412 = vunpack.c.h.b16 %v1261
    %v1413 = vunpack.c.l.b16 %v1262
    %v1414 = vunpack.c.h.b16 %v1262
    %v1415 = vunpack.c.l.b16 %v1263
    %v1416 = vunpack.c.h.b16 %v1263
    %v1417 = vunpack.c.l.b16 %v1264
    %v1418 = vunpack.c.h.b16 %v1264
    %v1419 = vunpack.c.l.b16 %v1265
    %v1420 = vunpack.c.h.b16 %v1265
    %v1421 = vunpack.c.l.b16 %v1266
    %v1422 = vunpack.c.h.b16 %v1266
    %v1423 = vunpack.c.l.b16 %v1267
    %v1424 = vunpack.c.h.b16 %v1267
    %v1425 = vunpack.c.l.b16 %v1268
    %v1426 = vunpack.c.h.b16 %v1268
    %v1427 = vunpack.c.l.b16 %v1269
    %v1428 = vunpack.c.h.b16 %v1269
    %v1429 = vunpack.c.l.b16 %v1270
    %v1430 = vunpack.c.h.b16 %v1270
    %v1431 = vunpack.c.l.b16 %v1271
    %v1432 = vunpack.c.h.b16 %v1271
    %v1433 = vunpack.c.l.b16 %v1272
    %v1434 = vunpack.c.h.b16 %v1272
    %v1435 = vunpack.c.l.b16 %v1273
    %v1436 = vunpack.c.h.b16 %v1273
    %v1437 = vunpack.c.l.b16 %v1274
    %v1438 = vunpack.c.h.b16 %v1274
    %v1439 = vunpack.c.l.b16 %v1275
    %v1440 = vunpack.c.h.b16 %v1275
    %v1441 = vunpack.c.l.b16 %v1276
    %v1442 = vunpack.c.h.b16 %v1276
    %v1443 = vunpack.c.l.b16 %v1277
    %v1444 = vunpack.c.h.b16 %v1277
    %v1445 = vunpack.c.l.b16 %v1278
    %v1446 = vunpack.c.h.b16 %v1278
    %v1447 = vunpack.c.l.b16 %v1279
    %v1448 = vunpack.c.h.b16 %v1279
    %v1449 = vunpack.c.l.b16 %v1280
    %v1450 = vunpack.c.h.b16 %v1280
    %v1451 = vunpack.c.l.b16 %v1281
    %v1452 = vunpack.c.h.b16 %v1281
    %v1453 = vunpack.c.l.b16 %v1282
    %v1454 = vunpack.c.h.b16 %v1282
    %v1455 = vunpack.c.l.b16 %v1283
    %v1456 = vunpack.c.h.b16 %v1283
    %v1457 = vunpack.c.l.b16 %v1284
    %v1458 = vunpack.c.h.b16 %v1284
    %v1459 = vunpack.c.l.b16 %v1285
    %v1460 = vunpack.c.h.b16 %v1285
    %v1461 = vunpack.c.l.b16 %v1286
    %v1462 = vunpack.c.h.b16 %v1286
    %v1463 = vunpack.c.l.b16 %v1287
    %v1464 = vunpack.c.h.b16 %v1287
    %v1465 = vunpack.c.l.b16 %v1288
    %v1466 = vunpack.c.h.b16 %v1288
    %v1467 = vunpack.c.l.b16 %v1289
    %v1468 = vunpack.c.h.b16 %v1289
    %v1469 = vunpack.c.l.b16 %v1290
    %v1470 = vunpack.c.h.b16 %v1290
    %v1471 = vunpack.c.l.b16 %v1291
    %v1472 = vunpack.c.h.b16 %v1291
    %v1473 = vunpack.c.l.b16 %v1292
    %v1474 = vunpack.c.h.b16 %v1292
    %v1475 = vunpack.c.l.b16 %v1293
    %v1476 = vunpack.c.h.b16 %v1293
    %v1477 = vunpack.c.l.b16 %v1294
    %v1478 = vunpack.c.h.b16 %v1294
    %v1479 = vunpack.c.l.b16 %v1295
    %v1480 = vunpack.c.h.b16 %v1295
    %v1481 = vunpack.c.l.b16 %v1296
    %v1482 = vunpack.c.h.b16 %v1296
    %v1483 = vunpack.c.l.b16 %v1297
    %v1484 = vunpack.c.h.b16 %v1297
    %v1485 = vunpack.c.l.b16 %v1298
    %v1486 = vunpack.c.h.b16 %v1298
    %v1487 = vunpack.c.l.b16 %v1299
    %v1488 = vunpack.c.h.b16 %v1299
    %v1489 = vunpack.c.l.b16 %v1300
    %v1490 = vunpack.c.h.b16 %v1300
    %v1491 = vunpack.c.l.b16 %v1301
    %v1492 = vunpack.c.h.b16 %v1301
    %v1493 = vunpack.c.l.b16 %v1302
    %v1494 = vunpack.c.h.b16 %v1302
    %v1495 = vpack.c.b16 %v1371, %v1367
    %v1496 = vpack.c.b16 %v1372, %v1368
    %v1497 = vpack.c.b16 %v1373, %v1369
    %v1498 = vpack.c.b16 %v1374, %v1370
    %v1499 = vpack.c.b16 %v1379, %v1375
    %v1500 = vpack.c.b16 %v1380, %v1376
    %v1501 = vpack.c.b16 %v1381, %v1377
    %v1502 = vpack.c.b16 %v1382, %v1378
    %v1503 = vpack.c.b16 %v1387, %v1383
    %v1504 = vpack.c.b16 %v1388, %v1384
    %v1505 = vpack.c.b16 %v1389, %v1385
    %v1506 = vpack.c.b16 %v1390, %v1386
    %v1507 = vpack.c.b16 %v1395, %v1391
    %v1508 = vpack.c.b16 %v1396, %v1392
    %v1509 = vpack.c.b16 %v1397, %v1393
    %v1510 = vpack.c.b16 %v1398, %v1394
    %v1511 = vpack.c.b16 %v1403, %v1399
    %v1512 = vpack.c.b16 %v1404, %v1400
    %v1513 = vpack.c.b16 %v1405, %v1401
    %v1514 = vpack.c.b16 %v1406, %v1402
    %v1515 = vpack.c.b16 %v1411, %v1407
    %v1516 = vpack.c.b16 %v1412, %v1408
    %v1517 = vpack.c.b16 %v1413, %v1409
    %v1518 = vpack.c.b16 %v1414, %v1410
    %v1519 = vpack.c.b16 %v1419, %v1415
    %v1520 = vpack.c.b16 %v1420, %v1416
    %v1521 = vpack.c.b16 %v1421, %v1417
    %v1522 = vpack.c.b16 %v1422, %v1418
    %v1523 = vpack.c.b16 %v1427, %v1423
    %v1524 = vpack.c.b16 %v1428, %v1424
    %v1525 = vpack.c.b16 %v1429, %v1425
    %v1526 = vpack.c.b16 %v1430, %v1426
    %v1527 = vpack.c.b16 %v1435, %v1431
    %v1528 = vpack.c.b16 %v1436, %v1432
    %v1529 = vpack.c.b16 %v1437, %v1433
    %v1530 = vpack.c.b16 %v1438, %v1434
    %v1531 = vpack.c.b16 %v1443, %v1439
    %v1532 = vpack.c.b16 %v1444, %v1440
    %v1533 = vpack.c.b16 %v1445, %v1441
    %v1534 = vpack.c.b16 %v1446, %v1442
    %v1535 = vpack.c.b16 %v1451, %v1447
    %v1536 = vpack.c.b16 %v1452, %v1448
    %v1537 = vpack.c.b16 %v1453, %v1449
    %v1538 = vpack.c.b16 %v1454, %v1450
    %v1539 = vpack.c.b16 %v1459, %v1455
    %v1540 = vpack.c.b16 %v1460, %v1456
    %v1541 = vpack.c.b16 %v1461, %v1457
    %v1542 = vpack.c.b16 %v1462, %v1458
    %v1543 = vpack.c.b16 %v1467, %v1463
    %v1544 = vpack.c.b16 %v1468, %v1464
    %v1545 = vpack.c.b16 %v1469, %v1465
    %v1546 = vpack.c.b16 %v1470, %v1466
    %v1547 = vpack.c.b16 %v1475, %v1471
    %v1548 = vpack.c.b16 %v1476, %v1472
    %v1549 = vpack.c.b16 %v1477, %v1473
    %v1550 = vpack.c.b16 %v1478, %v1474
    %v1551 = vpack.c.b16 %v1483, %v1479
    %v1552 = vpack.c.b16 %v1484, %v1480
    %v1553 = vpack.c.b16 %v1485, %v1481
    %v1554 = vpack.c.b16 %v1486, %v1482
    %v1555 = vpack.c.b16 %v1491, %v1487
    %v1556 = vpack.c.b16 %v1492, %v1488
    %v1557 = vpack.c.b16 %v1493, %v1489
    %v1558 = vpack.c.b16 %v1494, %v1490
    %1623 = vmatprep.subr.bf16.mxu0 %v1496
    %1624 = vmatpush1.bf16.msra.mxu0 %v1495
    %1625 = vmatprep.subr.bf16.mxu0 %v1500
    %1626 = vmatpush1.bf16.msra.mxu0 %v1499
    %1627 = vmatprep.subr.bf16.mxu0 %v1504
    %1628 = vmatpush1.bf16.msra.mxu0 %v1503
    %1629 = vmatprep.subr.bf16.mxu0 %v1508
    %1630 = vmatpush1.bf16.msra.mxu0 %v1507
    %1631 = vmatprep.subr.bf16.mxu0 %v1512
    %1632 = vmatpush1.bf16.msra.mxu0 %v1511
    %1633 = vmatprep.subr.bf16.mxu0 %v1516
    %1634 = vmatpush1.bf16.msra.mxu0 %v1515
    %1635 = vmatprep.subr.bf16.mxu0 %v1520
    %1636 = vmatpush1.bf16.msra.mxu0 %v1519
    %1637 = vmatprep.subr.bf16.mxu0 %v1524
    %1638 = vmatpush1.bf16.msra.mxu0 %v1523
    %1639 = vmatprep.subr.bf16.mxu0 %v1528
    %1640 = vmatpush1.bf16.msra.mxu0 %v1527
    %1641 = vmatprep.subr.bf16.mxu0 %v1532
    %1642 = vmatpush1.bf16.msra.mxu0 %v1531
    %1643 = vmatprep.subr.bf16.mxu0 %v1536
    %1644 = vmatpush1.bf16.msra.mxu0 %v1535
    %1645 = vmatprep.subr.bf16.mxu0 %v1540
    %1646 = vmatpush1.bf16.msra.mxu0 %v1539
    %1647 = vmatprep.subr.bf16.mxu0 %v1544
    %1648 = vmatpush1.bf16.msra.mxu0 %v1543
    %1649 = vmatprep.subr.bf16.mxu0 %v1548
    %1650 = vmatpush1.bf16.msra.mxu0 %v1547
    %1651 = vmatprep.subr.bf16.mxu0 %v1552
    %1652 = vmatpush1.bf16.msra.mxu0 %v1551
    %1653 = vmatprep.subr.bf16.mxu0 %v1556
    %1654 = vmatpush1.bf16.msra.mxu0 %v1555
    %1655 = vmatprep.mubr.bf16.mxu0 %v298
    %1656 = vmatmul.mubr.bf16.gmra.mrb[0].mxu0 %v297
    %v1657 = vpop.f32.mrb[0].mxu0
    %v1658 = vadd.f32 0.0, %v1657
    %v1659 = vpop.f32.mrb[0].mxu0
    %v1660 = vadd.f32 0.0, %v1659
    %v1661 = vpop.f32.mrb[0].mxu0
    %v1662 = vadd.f32 0.0, %v1661
    %v1663 = vpop.f32.mrb[0].mxu0
    %v1664 = vadd.f32 0.0, %v1663
    %1665 = vdwg.mxu0
    %1666 = vmatprep.subr.bf16.mxu0 %v1498
    %1667 = vmatpush1.bf16.msra.mxu0 %v1497
    %1668 = vmatprep.subr.bf16.mxu0 %v1502
    %1669 = vmatpush1.bf16.msra.mxu0 %v1501
    %1670 = vmatprep.subr.bf16.mxu0 %v1506
    %1671 = vmatpush1.bf16.msra.mxu0 %v1505
    %1672 = vmatprep.subr.bf16.mxu0 %v1510
    %1673 = vmatpush1.bf16.msra.mxu0 %v1509
    %1674 = vmatprep.subr.bf16.mxu0 %v1514
    %1675 = vmatpush1.bf16.msra.mxu0 %v1513
    %1676 = vmatprep.subr.bf16.mxu0 %v1518
    %1677 = vmatpush1.bf16.msra.mxu0 %v1517
    %1678 = vmatprep.subr.bf16.mxu0 %v1522
    %1679 = vmatpush1.bf16.msra.mxu0 %v1521
    %1680 = vmatprep.subr.bf16.mxu0 %v1526
    %1681 = vmatpush1.bf16.msra.mxu0 %v1525
    %1682 = vmatprep.subr.bf16.mxu0 %v1530
    %1683 = vmatpush1.bf16.msra.mxu0 %v1529
    %1684 = vmatprep.subr.bf16.mxu0 %v1534
    %1685 = vmatpush1.bf16.msra.mxu0 %v1533
    %1686 = vmatprep.subr.bf16.mxu0 %v1538
    %1687 = vmatpush1.bf16.msra.mxu0 %v1537
    %1688 = vmatprep.subr.bf16.mxu0 %v1542
    %1689 = vmatpush1.bf16.msra.mxu0 %v1541
    %1690 = vmatprep.subr.bf16.mxu0 %v1546
    %1691 = vmatpush1.bf16.msra.mxu0 %v1545
    %1692 = vmatprep.subr.bf16.mxu0 %v1550
    %1693 = vmatpush1.bf16.msra.mxu0 %v1549
    %1694 = vmatprep.subr.bf16.mxu0 %v1554
    %1695 = vmatpush1.bf16.msra.mxu0 %v1553
    %1696 = vmatprep.subr.bf16.mxu0 %v1558
    %1697 = vmatpush1.bf16.msra.mxu0 %v1557
    %1698 = vmatprep.mubr.bf16.mxu0 %v298
    %1699 = vmatmul.mubr.bf16.gmra.mrb[0].mxu0 %v297
    %v1700 = vpop.f32.mrb[0].mxu0
    %v1701 = vadd.f32 0.0, %v1700
    %v1702 = vpop.f32.mrb[0].mxu0
    %v1703 = vadd.f32 0.0, %v1702
    %v1704 = vpop.f32.mrb[0].mxu0
    %v1705 = vadd.f32 0.0, %v1704
    %v1706 = vpop.f32.mrb[0].mxu0
    %v1707 = vadd.f32 0.0, %v1706
    %1708 = vdwg.mxu0
    %v1709 = vadd.f32 %v1188, %v1658
    %v1710 = vadd.f32 %v1190, %v1660
    %v1711 = vadd.f32 %v1231, %v1701
    %v1712 = vadd.f32 %v1233, %v1703
    %v1713 = vadd.f32 %v1192, %v1662
    %v1714 = vadd.f32 %v1194, %v1664
    %v1715 = vadd.f32 %v1235, %v1705
    %v1716 = vadd.f32 %v1237, %v1707
    %v1717 = vld [vmem:[%s3] sm:$0xf]
    %v1719 = vlaneseq
    %v1720 = vshrl.u32 %v1719, 7
    %v1721 = vsub.s32 0, %v1720
    %v1722 = vrot.slane %v1717, %v1721
    %v1723 = vlaneseq
    %v1724 = vshrl.u32 %v1723, 7
    %v1725 = vsub.s32 1, %v1724
    %v1726 = vrot.slane %v1717, %v1725
    %v1727 = vlaneseq
    %v1728 = vshrl.u32 %v1727, 7
    %v1729 = vsub.s32 2, %v1728
    %v1730 = vrot.slane %v1717, %v1729
    %v1731 = vlaneseq
    %v1732 = vshrl.u32 %v1731, 7
    %v1733 = vsub.s32 3, %v1732
    %v1734 = vrot.slane %v1717, %v1733
    %v1739 = vadd.f32 %v1709, %v1722
    %v1740 = vadd.f32 %v1710, %v1726
    %v1741 = vadd.f32 %v1711, %v1730
    %v1742 = vadd.f32 %v1712, %v1734
    %v1743 = vadd.f32 %v1713, %v1722
    %v1744 = vadd.f32 %v1714, %v1726
    %v1745 = vadd.f32 %v1715, %v1730
    %v1746 = vadd.f32 %v1716, %v1734
    %v1747 = vmul.f32 %v1739, 0.01
    %v1748 = vmul.f32 %v1740, 0.01
    %v1749 = vmul.f32 %v1741, 0.01
    %v1750 = vmul.f32 %v1742, 0.01
    %v1751 = vmul.f32 %v1743, 0.01
    %v1752 = vmul.f32 %v1744, 0.01
    %v1753 = vmul.f32 %v1745, 0.01
    %v1754 = vmul.f32 %v1746, 0.01
    %v1755 = vmax.f32 %v1739, %v1747
    %v1756 = vmax.f32 %v1740, %v1748
    %v1757 = vmax.f32 %v1741, %v1749
    %v1758 = vmax.f32 %v1742, %v1750
    %v1759 = vmax.f32 %v1743, %v1751
    %v1760 = vmax.f32 %v1744, %v1752
    %v1761 = vmax.f32 %v1745, %v1753
    %v1762 = vmax.f32 %v1746, %v1754
    %v1763 = vpack.c.bf16 %v1759, %v1755
    %v1764 = vpack.c.bf16 %v1760, %v1756
    %v1765 = vpack.c.bf16 %v1761, %v1757
    %v1766 = vpack.c.bf16 %v1762, %v1758
    %v1767 = vld [vmem:[#allocation8] sm:$0xff]
    %v1768 = vld [vmem:[#allocation8 + $0x8] sm:$0xff]
    %v1769 = vld [vmem:[#allocation8 + $0x10] sm:$0xff]
    %v1770 = vld [vmem:[#allocation8 + $0x18] sm:$0xff]
    %v1771 = vld [vmem:[#allocation8 + $0x20] sm:$0xff]
    %v1772 = vld [vmem:[#allocation8 + $0x28] sm:$0xff]
    %v1773 = vld [vmem:[#allocation8 + $0x30] sm:$0xff]
    %v1774 = vld [vmem:[#allocation8 + $0x38] sm:$0xff]
    %v1775 = vld [vmem:[#allocation8 + $0x40] sm:$0xff]
    %v1776 = vld [vmem:[#allocation8 + $0x48] sm:$0xff]
    %v1777 = vld [vmem:[#allocation8 + $0x50] sm:$0xff]
    %v1778 = vld [vmem:[#allocation8 + $0x58] sm:$0xff]
    %v1779 = vld [vmem:[#allocation8 + $0x60] sm:$0xff]
    %v1780 = vld [vmem:[#allocation8 + $0x68] sm:$0xff]
    %v1781 = vld [vmem:[#allocation8 + $0x70] sm:$0xff]
    %v1782 = vld [vmem:[#allocation8 + $0x78] sm:$0xff]
    %v1783 = vld [vmem:[#allocation8 + $0x80] sm:$0xff]
    %v1784 = vld [vmem:[#allocation8 + $0x88] sm:$0xff]
    %v1785 = vld [vmem:[#allocation8 + $0x90] sm:$0xff]
    %v1786 = vld [vmem:[#allocation8 + $0x98] sm:$0xff]
    %v1787 = vld [vmem:[#allocation8 + $0xa0] sm:$0xff]
    %v1788 = vld [vmem:[#allocation8 + $0xa8] sm:$0xff]
    %v1789 = vld [vmem:[#allocation8 + $0xb0] sm:$0xff]
    %v1790 = vld [vmem:[#allocation8 + $0xb8] sm:$0xff]
    %v1791 = vld [vmem:[#allocation8 + $0xc0] sm:$0xff]
    %v1792 = vld [vmem:[#allocation8 + $0xc8] sm:$0xff]
    %v1793 = vld [vmem:[#allocation8 + $0xd0] sm:$0xff]
    %v1794 = vld [vmem:[#allocation8 + $0xd8] sm:$0xff]
    %v1795 = vld [vmem:[#allocation8 + $0xe0] sm:$0xff]
    %v1796 = vld [vmem:[#allocation8 + $0xe8] sm:$0xff]
    %v1797 = vld [vmem:[#allocation8 + $0xf0] sm:$0xff]
    %v1798 = vld [vmem:[#allocation8 + $0xf8] sm:$0xff]
    %v1799 = vld [vmem:[#allocation8 + $0x100] sm:$0xff]
    %v1800 = vld [vmem:[#allocation8 + $0x108] sm:$0xff]
    %v1801 = vld [vmem:[#allocation8 + $0x110] sm:$0xff]
    %v1802 = vld [vmem:[#allocation8 + $0x118] sm:$0xff]
    %v1803 = vld [vmem:[#allocation8 + $0x120] sm:$0xff]
    %v1804 = vld [vmem:[#allocation8 + $0x128] sm:$0xff]
    %v1805 = vld [vmem:[#allocation8 + $0x130] sm:$0xff]
    %v1806 = vld [vmem:[#allocation8 + $0x138] sm:$0xff]
    %v1807 = vld [vmem:[#allocation8 + $0x140] sm:$0xff]
    %v1808 = vld [vmem:[#allocation8 + $0x148] sm:$0xff]
    %v1809 = vld [vmem:[#allocation8 + $0x150] sm:$0xff]
    %v1810 = vld [vmem:[#allocation8 + $0x158] sm:$0xff]
    %v1811 = vld [vmem:[#allocation8 + $0x160] sm:$0xff]
    %v1812 = vld [vmem:[#allocation8 + $0x168] sm:$0xff]
    %v1813 = vld [vmem:[#allocation8 + $0x170] sm:$0xff]
    %v1814 = vld [vmem:[#allocation8 + $0x178] sm:$0xff]
    %v1815 = vld [vmem:[#allocation8 + $0x180] sm:$0xff]
    %v1816 = vld [vmem:[#allocation8 + $0x188] sm:$0xff]
    %v1817 = vld [vmem:[#allocation8 + $0x190] sm:$0xff]
    %v1818 = vld [vmem:[#allocation8 + $0x198] sm:$0xff]
    %v1819 = vld [vmem:[#allocation8 + $0x1a0] sm:$0xff]
    %v1820 = vld [vmem:[#allocation8 + $0x1a8] sm:$0xff]
    %v1821 = vld [vmem:[#allocation8 + $0x1b0] sm:$0xff]
    %v1822 = vld [vmem:[#allocation8 + $0x1b8] sm:$0xff]
    %v1823 = vld [vmem:[#allocation8 + $0x1c0] sm:$0xff]
    %v1824 = vld [vmem:[#allocation8 + $0x1c8] sm:$0xff]
    %v1825 = vld [vmem:[#allocation8 + $0x1d0] sm:$0xff]
    %v1826 = vld [vmem:[#allocation8 + $0x1d8] sm:$0xff]
    %v1827 = vld [vmem:[#allocation8 + $0x1e0] sm:$0xff]
    %v1828 = vld [vmem:[#allocation8 + $0x1e8] sm:$0xff]
    %v1829 = vld [vmem:[#allocation8 + $0x1f0] sm:$0xff]
    %v1830 = vld [vmem:[#allocation8 + $0x1f8] sm:$0xff]
    %v1831 = vld [vmem:[%s5] sm:$0x3]
    %v1833 = vlaneseq
    %v1834 = vshrl.u32 %v1833, 7
    %v1835 = vsub.s32 0, %v1834
    %v1836 = vrot.slane %v1831, %v1835
    %v1837 = vlaneseq
    %v1838 = vshrl.u32 %v1837, 7
    %v1839 = vsub.s32 1, %v1838
    %v1840 = vrot.slane %v1831, %v1839
    %v1907 = vunpack.c.l.b16 %v1767
    %v1908 = vunpack.c.h.b16 %v1767
    %v1909 = vunpack.c.l.b16 %v1768
    %v1910 = vunpack.c.h.b16 %v1768
    %v1911 = vunpack.c.l.b16 %v1769
    %v1912 = vunpack.c.h.b16 %v1769
    %v1913 = vunpack.c.l.b16 %v1770
    %v1914 = vunpack.c.h.b16 %v1770
    %v1915 = vunpack.c.l.b16 %v1771
    %v1916 = vunpack.c.h.b16 %v1771
    %v1917 = vunpack.c.l.b16 %v1772
    %v1918 = vunpack.c.h.b16 %v1772
    %v1919 = vunpack.c.l.b16 %v1773
    %v1920 = vunpack.c.h.b16 %v1773
    %v1921 = vunpack.c.l.b16 %v1774
    %v1922 = vunpack.c.h.b16 %v1774
    %v1923 = vunpack.c.l.b16 %v1775
    %v1924 = vunpack.c.h.b16 %v1775
    %v1925 = vunpack.c.l.b16 %v1776
    %v1926 = vunpack.c.h.b16 %v1776
    %v1927 = vunpack.c.l.b16 %v1777
    %v1928 = vunpack.c.h.b16 %v1777
    %v1929 = vunpack.c.l.b16 %v1778
    %v1930 = vunpack.c.h.b16 %v1778
    %v1931 = vunpack.c.l.b16 %v1779
    %v1932 = vunpack.c.h.b16 %v1779
    %v1933 = vunpack.c.l.b16 %v1780
    %v1934 = vunpack.c.h.b16 %v1780
    %v1935 = vunpack.c.l.b16 %v1781
    %v1936 = vunpack.c.h.b16 %v1781
    %v1937 = vunpack.c.l.b16 %v1782
    %v1938 = vunpack.c.h.b16 %v1782
    %v1939 = vunpack.c.l.b16 %v1783
    %v1940 = vunpack.c.h.b16 %v1783
    %v1941 = vunpack.c.l.b16 %v1784
    %v1942 = vunpack.c.h.b16 %v1784
    %v1943 = vunpack.c.l.b16 %v1785
    %v1944 = vunpack.c.h.b16 %v1785
    %v1945 = vunpack.c.l.b16 %v1786
    %v1946 = vunpack.c.h.b16 %v1786
    %v1947 = vunpack.c.l.b16 %v1787
    %v1948 = vunpack.c.h.b16 %v1787
    %v1949 = vunpack.c.l.b16 %v1788
    %v1950 = vunpack.c.h.b16 %v1788
    %v1951 = vunpack.c.l.b16 %v1789
    %v1952 = vunpack.c.h.b16 %v1789
    %v1953 = vunpack.c.l.b16 %v1790
    %v1954 = vunpack.c.h.b16 %v1790
    %v1955 = vunpack.c.l.b16 %v1791
    %v1956 = vunpack.c.h.b16 %v1791
    %v1957 = vunpack.c.l.b16 %v1792
    %v1958 = vunpack.c.h.b16 %v1792
    %v1959 = vunpack.c.l.b16 %v1793
    %v1960 = vunpack.c.h.b16 %v1793
    %v1961 = vunpack.c.l.b16 %v1794
    %v1962 = vunpack.c.h.b16 %v1794
    %v1963 = vunpack.c.l.b16 %v1795
    %v1964 = vunpack.c.h.b16 %v1795
    %v1965 = vunpack.c.l.b16 %v1796
    %v1966 = vunpack.c.h.b16 %v1796
    %v1967 = vunpack.c.l.b16 %v1797
    %v1968 = vunpack.c.h.b16 %v1797
    %v1969 = vunpack.c.l.b16 %v1798
    %v1970 = vunpack.c.h.b16 %v1798
    %v1971 = vunpack.c.l.b16 %v1799
    %v1972 = vunpack.c.h.b16 %v1799
    %v1973 = vunpack.c.l.b16 %v1800
    %v1974 = vunpack.c.h.b16 %v1800
    %v1975 = vunpack.c.l.b16 %v1801
    %v1976 = vunpack.c.h.b16 %v1801
    %v1977 = vunpack.c.l.b16 %v1802
    %v1978 = vunpack.c.h.b16 %v1802
    %v1979 = vunpack.c.l.b16 %v1803
    %v1980 = vunpack.c.h.b16 %v1803
    %v1981 = vunpack.c.l.b16 %v1804
    %v1982 = vunpack.c.h.b16 %v1804
    %v1983 = vunpack.c.l.b16 %v1805
    %v1984 = vunpack.c.h.b16 %v1805
    %v1985 = vunpack.c.l.b16 %v1806
    %v1986 = vunpack.c.h.b16 %v1806
    %v1987 = vunpack.c.l.b16 %v1807
    %v1988 = vunpack.c.h.b16 %v1807
    %v1989 = vunpack.c.l.b16 %v1808
    %v1990 = vunpack.c.h.b16 %v1808
    %v1991 = vunpack.c.l.b16 %v1809
    %v1992 = vunpack.c.h.b16 %v1809
    %v1993 = vunpack.c.l.b16 %v1810
    %v1994 = vunpack.c.h.b16 %v1810
    %v1995 = vunpack.c.l.b16 %v1811
    %v1996 = vunpack.c.h.b16 %v1811
    %v1997 = vunpack.c.l.b16 %v1812
    %v1998 = vunpack.c.h.b16 %v1812
    %v1999 = vunpack.c.l.b16 %v1813
    %v2000 = vunpack.c.h.b16 %v1813
    %v2001 = vunpack.c.l.b16 %v1814
    %v2002 = vunpack.c.h.b16 %v1814
    %v2003 = vunpack.c.l.b16 %v1815
    %v2004 = vunpack.c.h.b16 %v1815
    %v2005 = vunpack.c.l.b16 %v1816
    %v2006 = vunpack.c.h.b16 %v1816
    %v2007 = vunpack.c.l.b16 %v1817
    %v2008 = vunpack.c.h.b16 %v1817
    %v2009 = vunpack.c.l.b16 %v1818
    %v2010 = vunpack.c.h.b16 %v1818
    %v2011 = vunpack.c.l.b16 %v1819
    %v2012 = vunpack.c.h.b16 %v1819
    %v2013 = vunpack.c.l.b16 %v1820
    %v2014 = vunpack.c.h.b16 %v1820
    %v2015 = vunpack.c.l.b16 %v1821
    %v2016 = vunpack.c.h.b16 %v1821
    %v2017 = vunpack.c.l.b16 %v1822
    %v2018 = vunpack.c.h.b16 %v1822
    %v2019 = vunpack.c.l.b16 %v1823
    %v2020 = vunpack.c.h.b16 %v1823
    %v2021 = vunpack.c.l.b16 %v1824
    %v2022 = vunpack.c.h.b16 %v1824
    %v2023 = vunpack.c.l.b16 %v1825
    %v2024 = vunpack.c.h.b16 %v1825
    %v2025 = vunpack.c.l.b16 %v1826
    %v2026 = vunpack.c.h.b16 %v1826
    %v2027 = vunpack.c.l.b16 %v1827
    %v2028 = vunpack.c.h.b16 %v1827
    %v2029 = vunpack.c.l.b16 %v1828
    %v2030 = vunpack.c.h.b16 %v1828
    %v2031 = vunpack.c.l.b16 %v1829
    %v2032 = vunpack.c.h.b16 %v1829
    %v2033 = vunpack.c.l.b16 %v1830
    %v2034 = vunpack.c.h.b16 %v1830
    %v2035 = vpack.c.b16 %v1909, %v1907
    %v2036 = vpack.c.b16 %v1910, %v1908
    %v2037 = vpack.c.b16 %v1913, %v1911
    %v2038 = vpack.c.b16 %v1914, %v1912
    %v2039 = vpack.c.b16 %v1917, %v1915
    %v2040 = vpack.c.b16 %v1918, %v1916
    %v2041 = vpack.c.b16 %v1921, %v1919
    %v2042 = vpack.c.b16 %v1922, %v1920
    %v2043 = vpack.c.b16 %v1925, %v1923
    %v2044 = vpack.c.b16 %v1926, %v1924
    %v2045 = vpack.c.b16 %v1929, %v1927
    %v2046 = vpack.c.b16 %v1930, %v1928
    %v2047 = vpack.c.b16 %v1933, %v1931
    %v2048 = vpack.c.b16 %v1934, %v1932
    %v2049 = vpack.c.b16 %v1937, %v1935
    %v2050 = vpack.c.b16 %v1938, %v1936
    %v2051 = vpack.c.b16 %v1941, %v1939
    %v2052 = vpack.c.b16 %v1942, %v1940
    %v2053 = vpack.c.b16 %v1945, %v1943
    %v2054 = vpack.c.b16 %v1946, %v1944
    %v2055 = vpack.c.b16 %v1949, %v1947
    %v2056 = vpack.c.b16 %v1950, %v1948
    %v2057 = vpack.c.b16 %v1953, %v1951
    %v2058 = vpack.c.b16 %v1954, %v1952
    %v2059 = vpack.c.b16 %v1957, %v1955
    %v2060 = vpack.c.b16 %v1958, %v1956
    %v2061 = vpack.c.b16 %v1961, %v1959
    %v2062 = vpack.c.b16 %v1962, %v1960
    %v2063 = vpack.c.b16 %v1965, %v1963
    %v2064 = vpack.c.b16 %v1966, %v1964
    %v2065 = vpack.c.b16 %v1969, %v1967
    %v2066 = vpack.c.b16 %v1970, %v1968
    %v2067 = vpack.c.b16 %v1973, %v1971
    %v2068 = vpack.c.b16 %v1974, %v1972
    %v2069 = vpack.c.b16 %v1977, %v1975
    %v2070 = vpack.c.b16 %v1978, %v1976
    %v2071 = vpack.c.b16 %v1981, %v1979
    %v2072 = vpack.c.b16 %v1982, %v1980
    %v2073 = vpack.c.b16 %v1985, %v1983
    %v2074 = vpack.c.b16 %v1986, %v1984
    %v2075 = vpack.c.b16 %v1989, %v1987
    %v2076 = vpack.c.b16 %v1990, %v1988
    %v2077 = vpack.c.b16 %v1993, %v1991
    %v2078 = vpack.c.b16 %v1994, %v1992
    %v2079 = vpack.c.b16 %v1997, %v1995
    %v2080 = vpack.c.b16 %v1998, %v1996
    %v2081 = vpack.c.b16 %v2001, %v1999
    %v2082 = vpack.c.b16 %v2002, %v2000
    %v2083 = vpack.c.b16 %v2005, %v2003
    %v2084 = vpack.c.b16 %v2006, %v2004
    %v2085 = vpack.c.b16 %v2009, %v2007
    %v2086 = vpack.c.b16 %v2010, %v2008
    %v2087 = vpack.c.b16 %v2013, %v2011
    %v2088 = vpack.c.b16 %v2014, %v2012
    %v2089 = vpack.c.b16 %v2017, %v2015
    %v2090 = vpack.c.b16 %v2018, %v2016
    %v2091 = vpack.c.b16 %v2021, %v2019
    %v2092 = vpack.c.b16 %v2022, %v2020
    %v2093 = vpack.c.b16 %v2025, %v2023
    %v2094 = vpack.c.b16 %v2026, %v2024
    %v2095 = vpack.c.b16 %v2029, %v2027
    %v2096 = vpack.c.b16 %v2030, %v2028
    %v2097 = vpack.c.b16 %v2033, %v2031
    %v2098 = vpack.c.b16 %v2034, %v2032
    %2163 = vmatprep.subr.bf16.mxu0 %v2036
    %2164 = vmatpush1.bf16.msra.mxu0 %v2035
    %2165 = vmatprep.subr.bf16.mxu0 %v2038
    %2166 = vmatpush1.bf16.msra.mxu0 %v2037
    %2167 = vmatprep.subr.bf16.mxu0 %v2040
    %2168 = vmatpush1.bf16.msra.mxu0 %v2039
    %2169 = vmatprep.subr.bf16.mxu0 %v2042
    %2170 = vmatpush1.bf16.msra.mxu0 %v2041
    %2171 = vmatprep.subr.bf16.mxu0 %v2044
    %2172 = vmatpush1.bf16.msra.mxu0 %v2043
    %2173 = vmatprep.subr.bf16.mxu0 %v2046
    %2174 = vmatpush1.bf16.msra.mxu0 %v2045
    %2175 = vmatprep.subr.bf16.mxu0 %v2048
    %2176 = vmatpush1.bf16.msra.mxu0 %v2047
    %2177 = vmatprep.subr.bf16.mxu0 %v2050
    %2178 = vmatpush1.bf16.msra.mxu0 %v2049
    %2179 = vmatprep.subr.bf16.mxu0 %v2052
    %2180 = vmatpush1.bf16.msra.mxu0 %v2051
    %2181 = vmatprep.subr.bf16.mxu0 %v2054
    %2182 = vmatpush1.bf16.msra.mxu0 %v2053
    %2183 = vmatprep.subr.bf16.mxu0 %v2056
    %2184 = vmatpush1.bf16.msra.mxu0 %v2055
    %2185 = vmatprep.subr.bf16.mxu0 %v2058
    %2186 = vmatpush1.bf16.msra.mxu0 %v2057
    %2187 = vmatprep.subr.bf16.mxu0 %v2060
    %2188 = vmatpush1.bf16.msra.mxu0 %v2059
    %2189 = vmatprep.subr.bf16.mxu0 %v2062
    %2190 = vmatpush1.bf16.msra.mxu0 %v2061
    %2191 = vmatprep.subr.bf16.mxu0 %v2064
    %2192 = vmatpush1.bf16.msra.mxu0 %v2063
    %2193 = vmatprep.subr.bf16.mxu0 %v2066
    %2194 = vmatpush1.bf16.msra.mxu0 %v2065
    %2195 = vmatprep.mubr.bf16.mxu0 %v1764
    %2196 = vmatmul.mubr.bf16.gmra.mrb[0].mxu0 %v1763
    %v2197 = vpop.f32.mrb[0].mxu0
    %v2198 = vadd.f32 %v1836, %v2197
    %v2199 = vpop.f32.mrb[0].mxu0
    %v2200 = vadd.f32 %v1840, %v2199
    %v2201 = vpop.f32.mrb[0].mxu0
    %v2202 = vadd.f32 %v1836, %v2201
    %v2203 = vpop.f32.mrb[0].mxu0
    %v2204 = vadd.f32 %v1840, %v2203
    %2205 = vdwg.mxu0
    %2206 = vmatprep.subr.bf16.mxu0 %v2068
    %2207 = vmatpush1.bf16.msra.mxu0 %v2067
    %2208 = vmatprep.subr.bf16.mxu0 %v2070
    %2209 = vmatpush1.bf16.msra.mxu0 %v2069
    %2210 = vmatprep.subr.bf16.mxu0 %v2072
    %2211 = vmatpush1.bf16.msra.mxu0 %v2071
    %2212 = vmatprep.subr.bf16.mxu0 %v2074
    %2213 = vmatpush1.bf16.msra.mxu0 %v2073
    %2214 = vmatprep.subr.bf16.mxu0 %v2076
    %2215 = vmatpush1.bf16.msra.mxu0 %v2075
    %2216 = vmatprep.subr.bf16.mxu0 %v2078
    %2217 = vmatpush1.bf16.msra.mxu0 %v2077
    %2218 = vmatprep.subr.bf16.mxu0 %v2080
    %2219 = vmatpush1.bf16.msra.mxu0 %v2079
    %2220 = vmatprep.subr.bf16.mxu0 %v2082
    %2221 = vmatpush1.bf16.msra.mxu0 %v2081
    %2222 = vmatprep.subr.bf16.mxu0 %v2084
    %2223 = vmatpush1.bf16.msra.mxu0 %v2083
    %2224 = vmatprep.subr.bf16.mxu0 %v2086
    %2225 = vmatpush1.bf16.msra.mxu0 %v2085
    %2226 = vmatprep.subr.bf16.mxu0 %v2088
    %2227 = vmatpush1.bf16.msra.mxu0 %v2087
    %2228 = vmatprep.subr.bf16.mxu0 %v2090
    %2229 = vmatpush1.bf16.msra.mxu0 %v2089
    %2230 = vmatprep.subr.bf16.mxu0 %v2092
    %2231 = vmatpush1.bf16.msra.mxu0 %v2091
    %2232 = vmatprep.subr.bf16.mxu0 %v2094
    %2233 = vmatpush1.bf16.msra.mxu0 %v2093
    %2234 = vmatprep.subr.bf16.mxu0 %v2096
    %2235 = vmatpush1.bf16.msra.mxu0 %v2095
    %2236 = vmatprep.subr.bf16.mxu0 %v2098
    %2237 = vmatpush1.bf16.msra.mxu0 %v2097
    %2238 = vmatprep.mubr.bf16.mxu0 %v1766
    %2239 = vmatmul.mubr.bf16.gmra.mrb[0].mxu0 %v1765
    %v2240 = vpop.f32.mrb[0].mxu0
    %v2241 = vadd.f32 %v2198, %v2240
    %v2242 = vpop.f32.mrb[0].mxu0
    %v2243 = vadd.f32 %v2200, %v2242
    %v2244 = vpop.f32.mrb[0].mxu0
    %v2245 = vadd.f32 %v2202, %v2244
    %v2246 = vpop.f32.mrb[0].mxu0
    %v2247 = vadd.f32 %v2204, %v2246
    %2248 = vdwg.mxu0
    %v2249 = vmul.f32 %v2241, 0.01
    %v2250 = vmul.f32 %v2243, 0.01
    %v2251 = vmul.f32 %v2245, 0.01
    %v2252 = vmul.f32 %v2247, 0.01
    %v2253 = vmax.f32 %v2241, %v2249
    %v2254 = vmax.f32 %v2243, %v2250
    %v2255 = vmax.f32 %v2245, %v2251
    %v2256 = vmax.f32 %v2247, %v2252
    %2257 = vst [vmem:[#allocation10] sm:$0xff] %v2253
    %2258 = vst [vmem:[#allocation10 + $0x8] sm:$0xff] %v2254
    %2259 = vst [vmem:[#allocation10 + $0x10] sm:$0xff] %v2255
    %2260 = vst [vmem:[#allocation10 + $0x18] sm:$0xff] %v2256
    // Predicated region
    $region42: #{tpu_custom_call.1} parent=1 // pred_check
      _
    $region43: #{tpu_custom_call.1} parent=1 // pred_check_branch
      %2262 = sbr.rel (0) target = $region45
    $region44: #{tpu_custom_call.1} parent=1 // pred_region
      %s2264 = ssub.s32 512, 512
      %2265 = vsyncadd [#allocation4], %s2264
      %s2266 = sshll.u32 [#allocation10], 4
      %s2267 = int_to_ptr.vmem [resolvable:$true] %s2266
      %2272 = dma.vmem_to_hbm [thread:$0]  %s2267, 512, %s6, [#allocation4], 256, 256, 16
    $region45: #{tpu_custom_call.1} parent=1 // pred_fallthru
      _
    // Predicated region
    $region46: #{tpu_custom_call.1} parent=1 // pred_check
      _
    $region47: #{tpu_custom_call.1} parent=1 // pred_check_branch
      %2274 = sbr.rel (0) target = $region49
    $region48: #{tpu_custom_call.1} parent=1 // pred_region
      %2275 = dma.done [#allocation4], 512
    $region49: #{tpu_custom_call.1} parent=1 // pred_fallthru
      _
    %2276 = vsyncpa [#allocation3], 1
    %2277 = vsyncpa [#allocation6], 1
    %2278 = vsyncpa [#allocation9], 1
    %2279 = vsyncpa [#allocation4], 1

</llo_original>
